<compile_context>
chip_gen: v7x
topology: tpu7x:2x2x1
jax: 0.10.0
libtpu: 0.0.40
codegen_flags: <defaults>
</compile_context>

<pallas_src>
import functools

import jax
import jax.numpy as jnp
from jax.experimental import pallas as pl
from jax.experimental.pallas import tpu as pltpu

LN_EPS = 1e-5                       # torch.nn.LayerNorm default eps
_SQRT_HALF = 0.7071067811865476     # 1/sqrt(2) for exact (erf) GELU
_HAS_BUFFERED = hasattr(pl, "Buffered")


def _vmem_limit_bytes():
    """Generation-aware scoped-VMEM limit (headroom below physical capacity)."""
    cap = 64 * 1024 * 1024
    try:
        info = pltpu.get_tpu_info()
        cap = int(getattr(info, "vmem_capacity_bytes", cap)) or cap
    except Exception:
        pass
    # ~48 MiB on the 64 MiB (v7x) part, ~100 MiB on the 128 MiB (v5e/v6e) parts.
    return max(32 * 1024 * 1024, min(cap - 16 * 1024 * 1024, 100 * 1024 * 1024))


def _layernorm(x, gamma, beta):
    """LayerNorm over the last dim in f32. gamma/beta are (1, D)."""
    mu = jnp.mean(x, axis=-1, keepdims=True)
    xc = x - mu
    var = jnp.mean(xc * xc, axis=-1, keepdims=True)
    return xc * jax.lax.rsqrt(var + jnp.float32(LN_EPS)) * gamma + beta


# ----------------------------------------------------------------------------
# Kernel 1: norm1 + multi-head self-attention (per head group) + partial proj
# ----------------------------------------------------------------------------
def attn_group_kernel(x_ref, g1_ref, be1_ref, wqkv_ref, bqkv_ref, wp_ref,
                      bp_ref, o_ref, acc_ref, *, heads_per_group, head_dim,
                      scale):
    g = pl.program_id(1)
    cdt = wqkv_ref.dtype                                        # MXU compute dtype

    x = x_ref[0].astype(jnp.float32)                            # (N, D)
    xn = _layernorm(x, g1_ref[...], be1_ref[...])               # (N, D) f32

    # group-local qkv projection: (N, D) @ (D, 3*Dg) + (1, 3*Dg)
    qkv = jnp.dot(xn.astype(cdt), wqkv_ref[0],
                  preferred_element_type=jnp.float32) + bqkv_ref[0]
    Dg = heads_per_group * head_dim
    q = qkv[:, :Dg]
    k = qkv[:, Dg:2 * Dg]
    v = qkv[:, 2 * Dg:]

    # Per-head attention (unrolled at trace time; static lane slices).
    for h in range(heads_per_group):
        sl = slice(h * head_dim, (h + 1) * head_dim)
        qh = (q[:, sl] * jnp.float32(scale)).astype(cdt)        # (N, hd) bf16
        kh = k[:, sl].astype(cdt)
        vh = v[:, sl].astype(cdt)
        # (N, N) scores: contract head_dim directly (no explicit transpose).
        s = jax.lax.dot_general(qh, kh, (((1,), (1,)), ((), ())),
                                preferred_element_type=jnp.float32)
        s = s - jnp.max(s, axis=-1, keepdims=True)              # f32 softmax
        p = jnp.exp(s)
        p = p * pl.reciprocal(jnp.sum(p, axis=-1, keepdims=True), approx=True)
        # Write this head's output at its lane offset in the VMEM scratch.
        acc_ref[:, sl] = jnp.dot(p.astype(cdt), vh,
                                 preferred_element_type=jnp.float32).astype(cdt)

    # Partial output projection for this head group: (N, Dg) @ (Dg, D).
    proj = jnp.dot(acc_ref[...], wp_ref[0], preferred_element_type=jnp.float32)

    @pl.when(g == 0)
    def _():
        o_ref[0] = (x + proj + bp_ref[...]).astype(o_ref.dtype)

    @pl.when(g != 0)
    def _():
        o_ref[0] = proj.astype(o_ref.dtype)


# ----------------------------------------------------------------------------
# Kernel 2: norm2 + fc1 + GELU + fc2 + residual (token-tiled)
# ----------------------------------------------------------------------------
def mlp_block_kernel(x_ref, g2_ref, be2_ref, w1_ref, b1_ref, w2_ref, b2_ref,
                     o_ref):
    # NOTE: on a partial last tile the OOB rows contain padded garbage; LN/GELU
    # on them is harmless (var+eps>0, writes are clipped).  Do NOT mask.
    x = x_ref[...].astype(jnp.float32)                          # (TM, D)
    xn = _layernorm(x, g2_ref[...], be2_ref[...])

    h = jnp.dot(xn.astype(w1_ref.dtype), w1_ref[...],
                preferred_element_type=jnp.float32) + b1_ref[...]
    # exact (erf-based) GELU in f32 — matches torch.nn.GELU() default
    h = 0.5 * h * (1.0 + jax.lax.erf(h * jnp.float32(_SQRT_HALF)))

    y = jnp.dot(h.astype(w2_ref.dtype), w2_ref[...],
                preferred_element_type=jnp.float32) + b2_ref[...]
    o_ref[...] = (x + y).astype(o_ref.dtype)


# ----------------------------------------------------------------------------
# Wrapper
# ----------------------------------------------------------------------------
def vit_block(x, params, *, num_heads, head_groups=None, mlp_token_tile=512,
              compute_dtype=jnp.bfloat16):
    """ViTBlock forward (window_size=0, dropout=0).

    x: (B, N, D).  params (weights pre-transposed to (in, out)):
      g1, be1 : (D,)         norm1 weight / bias
      wqkv    : (D, 3D)      qkv_proj weight (qkv_bias=True)
      bqkv    : (3D,)
      wp, bp  : (D, D), (D,) attention output proj
      g2, be2 : (D,)         norm2 weight / bias
      w1, b1  : (D, M), (M,) fc1
      w2, b2  : (M, D), (D,) fc2
    compute_dtype: dtype for MXU operands (weights + matmul inputs); f32 accum.
      bf16 (default) unlocks full MXU rate and halves weight VMEM/HBM traffic.
    head_groups: second "parallel" grid axis of the attention kernel; default 2
      when num_heads is even (keeps both v7x TensorCores busy even for B == 1).
    """
    B, N, D = x.shape
    M = params["w1"].shape[1]
    hd = D // num_heads
    scale = float(hd) ** -0.5

    if head_groups is None:
        head_groups = 2 if (num_heads % 2 == 0 and num_heads >= 2) else 1
    HG = head_groups
    assert num_heads % HG == 0, "num_heads must be divisible by head_groups"
    hpg = num_heads // HG           # heads per group
    Dg = hpg * hd                   # features per group

    cdt = jnp.dtype(compute_dtype if compute_dtype is not None else jnp.float32)

    # ---- parameter prep (f32 biases/LN affine; compute_dtype weights) ----
    g1 = params["g1"].reshape(1, D).astype(jnp.float32)
    be1 = params["be1"].reshape(1, D).astype(jnp.float32)
    g2 = params["g2"].reshape(1, D).astype(jnp.float32)
    be2 = params["be2"].reshape(1, D).astype(jnp.float32)
    bp = params["bp"].reshape(1, D).astype(jnp.float32)
    b1 = params["b1"].reshape(1, M).astype(jnp.float32)
    b2 = params["b2"].reshape(1, D).astype(jnp.float32)
    w1 = params["w1"].astype(cdt)
    w2 = params["w2"].astype(cdt)

    # Group wqkv columns / wp rows head-group-major so each grid step only
    # touches a (D, 3*Dg) / (Dg, D) slice.
    wqkv = params["wqkv"]
    bqkv = params["bqkv"]
    wq, wk, wv = wqkv[:, :D], wqkv[:, D:2 * D], wqkv[:, 2 * D:]
    bq, bk, bv = bqkv[:D], bqkv[D:2 * D], bqkv[2 * D:]
    wqkv_g = jnp.stack(
        [jnp.concatenate([wq[:, g * Dg:(g + 1) * Dg],
                          wk[:, g * Dg:(g + 1) * Dg],
                          wv[:, g * Dg:(g + 1) * Dg]], axis=1)
         for g in range(HG)], axis=0).astype(cdt)               # (HG, D, 3*Dg)
    bqkv_g = jnp.stack(
        [jnp.concatenate([bq[g * Dg:(g + 1) * Dg],
                          bk[g * Dg:(g + 1) * Dg],
                          bv[g * Dg:(g + 1) * Dg]], axis=0)
         for g in range(HG)], axis=0).reshape(HG, 1, 3 * Dg).astype(jnp.float32)
    wp_g = params["wp"].astype(cdt).reshape(HG, Dg, D)          # row groups

    vmem_limit = _vmem_limit_bytes()
    wbytes = cdt.itemsize
    xbytes = x.dtype.itemsize

    # ---- attention + first residual: grid (B, head_groups), both parallel ----
    attn_flops = B * (2 * N * D * 3 * D + 4 * N * N * D + 2 * N * D * D)
    attn_trans = B * num_heads * N * N
    attn_bytes = (B * N * D * xbytes                     # x read
                  + HG * B * N * D * 4                   # partial outputs
                  + (3 * D * D + D * D) * wbytes         # wqkv + wp
                  + (3 * D + 4 * D) * 4)                 # biases + LN affine

    def run_attn(single_buffer):
        const = ({"pipeline_mode": pl.Buffered(1)} if single_buffer else {})
        grid_spec = pltpu.PrefetchScalarGridSpec(
            num_scalar_prefetch=0,
            grid=(B, HG),
            in_specs=[
                pl.BlockSpec((1, N, D), lambda b, g: (b, 0, 0)),
                pl.BlockSpec((1, D), lambda b, g: (0, 0), **const),
                pl.BlockSpec((1, D), lambda b, g: (0, 0), **const),
                pl.BlockSpec((1, D, 3 * Dg), lambda b, g: (g, 0, 0)),
                pl.BlockSpec((1, 1, 3 * Dg), lambda b, g: (g, 0, 0)),
                pl.BlockSpec((1, Dg, D), lambda b, g: (g, 0, 0)),
                pl.BlockSpec((1, D), lambda b, g: (0, 0), **const),
            ],
            out_specs=pl.BlockSpec((1, N, D), lambda b, g: (g * B + b, 0, 0)),
            scratch_shapes=[pltpu.VMEM((N, Dg), cdt)],
        )
        return pl.pallas_call(
            functools.partial(attn_group_kernel, heads_per_group=hpg,
                              head_dim=hd, scale=scale),
            out_shape=jax.ShapeDtypeStruct((HG * B, N, D), jnp.float32),
            grid_spec=grid_spec,
            compiler_params=pltpu.CompilerParams(
                dimension_semantics=("parallel", "parallel"),
                vmem_limit_bytes=vmem_limit),
            cost_estimate=pl.CostEstimate(
                flops=int(attn_flops), transcendentals=int(attn_trans),
                bytes_accessed=int(attn_bytes)),
        )(x, g1, be1, wqkv_g, bqkv_g, wp_g, bp)

    try:
        partials = run_attn(_HAS_BUFFERED)
    except Exception:
        partials = run_attn(False)   # fallback: default double-buffered specs

    # Cheap cross-group sum; residual + proj bias were added in group 0.
    x_attn = partials.reshape(HG, B, N, D).sum(axis=0).astype(x.dtype)

    # ---- MLP + second residual (grid over token tiles) ----
    T = B * N
    TM = T if T <= mlp_token_tile else mlp_token_tile
    grid_m = pl.cdiv(T, TM)
    x2d = x_attn.reshape(T, D)

    mlp_flops = 4 * T * D * M
    mlp_trans = T * M
    mlp_bytes = (2 * T * D * xbytes + 2 * D * M * wbytes + (M + 5 * D) * 4)

    def run_mlp(single_buffer):
        const = ({"pipeline_mode": pl.Buffered(1)} if single_buffer else {})
        grid_spec = pltpu.PrefetchScalarGridSpec(
            num_scalar_prefetch=0,
            grid=(grid_m,),
            in_specs=[
                pl.BlockSpec((TM, D), lambda i: (i, 0)),            # x tile
                pl.BlockSpec((1, D), lambda i: (0, 0), **const),    # resident
                pl.BlockSpec((1, D), lambda i: (0, 0), **const),
                pl.BlockSpec((D, M), lambda i: (0, 0), **const),
                pl.BlockSpec((1, M), lambda i: (0, 0), **const),
                pl.BlockSpec((M, D), lambda i: (0, 0), **const),
                pl.BlockSpec((1, D), lambda i: (0, 0), **const),
            ],
            out_specs=pl.BlockSpec((TM, D), lambda i: (i, 0)),
        )
        return pl.pallas_call(
            mlp_block_kernel,
            out_shape=jax.ShapeDtypeStruct((T, D), x.dtype),
            grid_spec=grid_spec,
            compiler_params=pltpu.CompilerParams(
                dimension_semantics=("parallel",),
                vmem_limit_bytes=vmem_limit),
            cost_estimate=pl.CostEstimate(
                flops=int(mlp_flops), transcendentals=int(mlp_trans),
                bytes_accessed=int(mlp_bytes)),
        )(x2d, g2, be2, w1, b1, w2, b2)

    try:
        out2d = run_mlp(_HAS_BUFFERED)
    except Exception:
        out2d = run_mlp(False)

    return out2d.reshape(B, N, D)


# ----------------------------------------------------------------------------
# Pure-JAX reference (mirrors the PyTorch module, window_size=0, dropout=0)
# ----------------------------------------------------------------------------
def vit_block_ref(x, p, *, num_heads):
    def ln(v, g, b):
        mu = v.mean(-1, keepdims=True)
        var = ((v - mu) ** 2).mean(-1, keepdims=True)
        return (v - mu) / jnp.sqrt(var + LN_EPS) * g + b

    B, N, D = x.shape
    hd = D // num_heads
    scale = hd ** -0.5

    xn = ln(x, p["g1"], p["be1"])
    qkv = xn @ p["wqkv"] + p["bqkv"]
    q, k, v = jnp.split(qkv, 3, axis=-1)
    q = q.reshape(B, N, num_heads, hd).transpose(0, 2, 1, 3)
    k = k.reshape(B, N, num_heads, hd).transpose(0, 2, 1, 3)
    v = v.reshape(B, N, num_heads, hd).transpose(0, 2, 1, 3)
    attn = (q * scale) @ k.transpose(0, 1, 3, 2)
    attn = jax.nn.softmax(attn, axis=-1)
    o = (attn @ v).transpose(0, 2, 1, 3).reshape(B, N, D)
    o = o @ p["wp"] + p["bp"]
    x = x + o
    h = ln(x, p["g2"], p["be2"])
    h = h @ p["w1"] + p["b1"]
    h = jax.nn.gelu(h, approximate=False)
    h = h @ p["w2"] + p["b2"]
    return x + h


if __name__ == "__main__":
    # Small ViT-like shapes: batch=2, seq=8 tokens, dim=32, heads=4, mlp=4*dim
    B, N, D = 2, 8, 32
    num_heads = 4
    M = 4 * D

    key = jax.random.PRNGKey(0)
    ks = jax.random.split(key, 10)
    x = jax.random.normal(ks[0], (B, N, D), dtype=jnp.float32)

    params = {
        "g1": jnp.ones((D,), jnp.float32),
        "be1": jnp.zeros((D,), jnp.float32),
        # PyTorch nn.Linear weight is (out, in); stored pre-transposed (in, out).
        "wqkv": jax.random.normal(ks[1], (D, 3 * D), jnp.float32) * (D ** -0.5),
        "bqkv": jax.random.normal(ks[2], (3 * D,), jnp.float32) * 0.01,
        "wp": jax.random.normal(ks[3], (D, D), jnp.float32) * (D ** -0.5),
        "bp": jax.random.normal(ks[4], (D,), jnp.float32) * 0.01,
        "g2": jnp.ones((D,), jnp.float32),
        "be2": jnp.zeros((D,), jnp.float32),
        "w1": jax.random.normal(ks[5], (D, M), jnp.float32) * (D ** -0.5),
        "b1": jax.random.normal(ks[6], (M,), jnp.float32) * 0.01,
        "w2": jax.random.normal(ks[7], (M, D), jnp.float32) * (M ** -0.5),
        "b2": jnp.random.normal(ks[8], (D,), jnp.float32) * 0.01
        if hasattr(jnp, "random") else
        jax.random.normal(ks[8], (D,), jnp.float32) * 0.01,
    }
    # (guard above is a no-op on standard jax; keep b2 from jax.random)
    params["b2"] = jax.random.normal(ks[8], (D,), jnp.float32) * 0.01

    ref = vit_block_ref(x, params, num_heads=num_heads)

    # f32 MXU path (tight-ish check; approx reciprocal is the only approximation)
    out_f32 = vit_block(x, params, num_heads=num_heads,
                        compute_dtype=jnp.float32)
    out_f32 = jax.block_until_ready(out_f32)
    assert out_f32.shape == (B, N, D)
    assert jnp.allclose(out_f32, ref, atol=2e-2, rtol=2e-2), "f32 mismatch"

    # default bf16 MXU path (looser tolerance for bf16 operands)
    out_bf16 = vit_block(x, params, num_heads=num_heads)
    out_bf16 = jax.block_until_ready(out_bf16)
    assert out_bf16.shape == (B, N, D)
    assert jnp.allclose(out_bf16, ref, atol=1e-1, rtol=1e-1), "bf16 mismatch"

    print("KERNEL_OK")
</pallas_src>

<mosaic_0001>
module attributes {stable_mosaic.version = 11 : i64} {
  func.func @attn_group_kernel(%arg0: i32, %arg1: i32, %arg2: memref<1x8x32xf32, #tpu.memory_space<vmem>>, %arg3: memref<1x32xf32, #tpu.memory_space<vmem>>, %arg4: memref<1x32xf32, #tpu.memory_space<vmem>>, %arg5: memref<1x32x48xf32, #tpu.memory_space<vmem>>, %arg6: memref<1x1x48xf32, #tpu.memory_space<vmem>>, %arg7: memref<1x16x32xf32, #tpu.memory_space<vmem>>, %arg8: memref<1x32xf32, #tpu.memory_space<vmem>>, %arg9: memref<1x8x32xf32, #tpu.memory_space<vmem>>, %arg10: memref<8x16xf32, #tpu.memory_space<vmem>>) attributes {dimension_semantics = [#tpu.dimension_semantics<parallel>, #tpu.dimension_semantics<parallel>], iteration_bounds = array<i64: 2, 2>, scalar_prefetch = 0 : i64, scratch_operands = 1 : i64, tpu.core_type = #tpu.core_type<tc>, window_params = [{transform_indices = @transform_0, window_bounds = array<i64: 1, 8, 32>}, {pipeline_mode = #tpu.pipeline_mode<synchronous>, transform_indices = @transform_1, window_bounds = array<i64: 1, 32>}, {pipeline_mode = #tpu.pipeline_mode<synchronous>, transform_indices = @transform_2, window_bounds = array<i64: 1, 32>}, {transform_indices = @transform_3, window_bounds = array<i64: 1, 32, 48>}, {transform_indices = @transform_4, window_bounds = array<i64: 1, 1, 48>}, {transform_indices = @transform_5, window_bounds = array<i64: 1, 16, 32>}, {pipeline_mode = #tpu.pipeline_mode<synchronous>, transform_indices = @transform_6, window_bounds = array<i64: 1, 32>}, {transform_indices = @transform_7, window_bounds = array<i64: 1, 8, 32>}]} {
    %c0 = arith.constant 0 : index
    %c0_0 = arith.constant 0 : index
    %c0_1 = arith.constant 0 : index
    %0 = vector.load %arg2[%c0, %c0_0, %c0_1] : memref<1x8x32xf32, #tpu.memory_space<vmem>>, vector<1x8x32xf32>
    %1 = vector.shape_cast %0 : vector<1x8x32xf32> to vector<8x32xf32>
    %c0_2 = arith.constant 0 : index
    %c0_3 = arith.constant 0 : index
    %2 = vector.load %arg3[%c0_2, %c0_3] : memref<1x32xf32, #tpu.memory_space<vmem>>, vector<1x32xf32>
    %c0_4 = arith.constant 0 : index
    %c0_5 = arith.constant 0 : index
    %3 = vector.load %arg4[%c0_4, %c0_5] : memref<1x32xf32, #tpu.memory_space<vmem>>, vector<1x32xf32>
    %cst = arith.constant dense<0.000000e+00> : vector<8xf32>
    %4 = vector.multi_reduction <add>, %1, %cst [1] : vector<8x32xf32> to vector<8xf32>
    %5 = vector.shape_cast %4 : vector<8xf32> to vector<8x1xf32>
    %cst_6 = arith.constant 3.200000e+01 : f32
    %6 = vector.broadcast %cst_6 : f32 to vector<8x1xf32>
    %7 = arith.divf %5, %6 : vector<8x1xf32>
    %8 = vector.broadcast %7 : vector<8x1xf32> to vector<8x32xf32>
    %9 = arith.subf %1, %8 : vector<8x32xf32>
    %10 = arith.mulf %9, %9 : vector<8x32xf32>
    %cst_7 = arith.constant dense<0.000000e+00> : vector<8xf32>
    %11 = vector.multi_reduction <add>, %10, %cst_7 [1] : vector<8x32xf32> to vector<8xf32>
    %12 = vector.shape_cast %11 : vector<8xf32> to vector<8x1xf32>
    %cst_8 = arith.constant 3.200000e+01 : f32
    %13 = vector.broadcast %cst_8 : f32 to vector<8x1xf32>
    %14 = arith.divf %12, %13 : vector<8x1xf32>
    %cst_9 = arith.constant 9.99999974E-6 : f32
    %15 = vector.broadcast %cst_9 : f32 to vector<8x1xf32>
    %16 = arith.addf %14, %15 : vector<8x1xf32>
    %17 = math.rsqrt %16 : vector<8x1xf32>
    %18 = vector.broadcast %17 : vector<8x1xf32> to vector<8x32xf32>
    %19 = arith.mulf %9, %18 : vector<8x32xf32>
    %20 = vector.broadcast %2 : vector<1x32xf32> to vector<8x32xf32>
    %21 = arith.mulf %19, %20 : vector<8x32xf32>
    %22 = vector.broadcast %3 : vector<1x32xf32> to vector<8x32xf32>
    %23 = arith.addf %21, %22 : vector<8x32xf32>
    %c0_10 = arith.constant 0 : index
    %c0_11 = arith.constant 0 : index
    %c0_12 = arith.constant 0 : index
    %24 = vector.load %arg5[%c0_10, %c0_11, %c0_12] : memref<1x32x48xf32, #tpu.memory_space<vmem>>, vector<1x32x48xf32>
    %25 = vector.shape_cast %24 : vector<1x32x48xf32> to vector<32x48xf32>
    %cst_13 = arith.constant dense<0.000000e+00> : vector<8x48xf32>
    %26 = tpu.matmul %23, %25, %cst_13 {dimension_numbers = #tpu.dot_dimension_numbers<[1], [0], [0], [1], [0, 0, 1, 1], [], []>} : vector<8x32xf32>, vector<32x48xf32>, vector<8x48xf32> -> vector<8x48xf32>
    %c0_14 = arith.constant 0 : index
    %c0_15 = arith.constant 0 : index
    %c0_16 = arith.constant 0 : index
    %27 = vector.load %arg6[%c0_14, %c0_15, %c0_16] : memref<1x1x48xf32, #tpu.memory_space<vmem>>, vector<1x1x48xf32>
    %28 = vector.shape_cast %27 : vector<1x1x48xf32> to vector<1x48xf32>
    %29 = vector.broadcast %28 : vector<1x48xf32> to vector<8x48xf32>
    %30 = arith.addf %26, %29 : vector<8x48xf32>
    %31 = vector.extract_strided_slice %30 {offsets = [0, 0], sizes = [8, 16], strides = [1, 1]} : vector<8x48xf32> to vector<8x16xf32>
    %32 = vector.extract_strided_slice %30 {offsets = [0, 16], sizes = [8, 16], strides = [1, 1]} : vector<8x48xf32> to vector<8x16xf32>
    %33 = vector.extract_strided_slice %30 {offsets = [0, 32], sizes = [8, 16], strides = [1, 1]} : vector<8x48xf32> to vector<8x16xf32>
    %34 = vector.extract_strided_slice %31 {offsets = [0, 0], sizes = [8, 8], strides = [1, 1]} : vector<8x16xf32> to vector<8x8xf32>
    %cst_17 = arith.constant 0.353553385 : f32
    %35 = vector.broadcast %cst_17 : f32 to vector<8x8xf32>
    %36 = arith.mulf %34, %35 : vector<8x8xf32>
    %37 = vector.extract_strided_slice %32 {offsets = [0, 0], sizes = [8, 8], strides = [1, 1]} : vector<8x16xf32> to vector<8x8xf32>
    %38 = vector.extract_strided_slice %33 {offsets = [0, 0], sizes = [8, 8], strides = [1, 1]} : vector<8x16xf32> to vector<8x8xf32>
    %cst_18 = arith.constant dense<0.000000e+00> : vector<8x8xf32>
    %39 = tpu.matmul %36, %37, %cst_18 {dimension_numbers = #tpu.dot_dimension_numbers<[1], [1], [0], [0], [0, 0, 1, 0], [], []>} : vector<8x8xf32>, vector<8x8xf32>, vector<8x8xf32> -> vector<8x8xf32>
    %cst_19 = arith.constant dense<0xFF800000> : vector<8xf32>
    %40 = vector.multi_reduction <maximumf>, %39, %cst_19 [1] : vector<8x8xf32> to vector<8xf32>
    %41 = vector.shape_cast %40 : vector<8xf32> to vector<8x1xf32>
    %42 = vector.broadcast %41 : vector<8x1xf32> to vector<8x8xf32>
    %43 = arith.subf %39, %42 : vector<8x8xf32>
    %44 = math.exp %43 : vector<8x8xf32>
    %cst_20 = arith.constant dense<0.000000e+00> : vector<8xf32>
    %45 = vector.multi_reduction <add>, %44, %cst_20 [1] : vector<8x8xf32> to vector<8xf32>
    %46 = vector.shape_cast %45 : vector<8xf32> to vector<8x1xf32>
    %47 = tpu.reciprocal %46 {approx = true} : vector<8x1xf32> -> vector<8x1xf32>
    %48 = vector.broadcast %47 : vector<8x1xf32> to vector<8x8xf32>
    %49 = arith.mulf %44, %48 : vector<8x8xf32>
    %cst_21 = arith.constant dense<0.000000e+00> : vector<8x8xf32>
    %50 = tpu.matmul %49, %38, %cst_21 {dimension_numbers = #tpu.dot_dimension_numbers<[1], [0], [0], [1], [0, 0, 1, 1], [], []>} : vector<8x8xf32>, vector<8x8xf32>, vector<8x8xf32> -> vector<8x8xf32>
    %c0_22 = arith.constant 0 : index
    %c0_23 = arith.constant 0 : index
    %51 = vector.load %arg10[%c0_22, %c0_23] : memref<8x16xf32, #tpu.memory_space<vmem>>, vector<8x8xf32>
    tpu.vector_store %arg10[%c0_22, %c0_23], %50 {strides = array<i32>} : memref<8x16xf32, #tpu.memory_space<vmem>>, vector<8x8xf32>,
    %52 = vector.extract_strided_slice %31 {offsets = [0, 8], sizes = [8, 8], strides = [1, 1]} : vector<8x16xf32> to vector<8x8xf32>
    %cst_24 = arith.constant 0.353553385 : f32
    %53 = vector.broadcast %cst_24 : f32 to vector<8x8xf32>
    %54 = arith.mulf %52, %53 : vector<8x8xf32>
    %55 = vector.extract_strided_slice %32 {offsets = [0, 8], sizes = [8, 8], strides = [1, 1]} : vector<8x16xf32> to vector<8x8xf32>
    %56 = vector.extract_strided_slice %33 {offsets = [0, 8], sizes = [8, 8], strides = [1, 1]} : vector<8x16xf32> to vector<8x8xf32>
    %cst_25 = arith.constant dense<0.000000e+00> : vector<8x8xf32>
    %57 = tpu.matmul %54, %55, %cst_25 {dimension_numbers = #tpu.dot_dimension_numbers<[1], [1], [0], [0], [0, 0, 1, 0], [], []>} : vector<8x8xf32>, vector<8x8xf32>, vector<8x8xf32> -> vector<8x8xf32>
    %cst_26 = arith.constant dense<0xFF800000> : vector<8xf32>
    %58 = vector.multi_reduction <maximumf>, %57, %cst_26 [1] : vector<8x8xf32> to vector<8xf32>
    %59 = vector.shape_cast %58 : vector<8xf32> to vector<8x1xf32>
    %60 = vector.broadcast %59 : vector<8x1xf32> to vector<8x8xf32>
    %61 = arith.subf %57, %60 : vector<8x8xf32>
    %62 = math.exp %61 : vector<8x8xf32>
    %cst_27 = arith.constant dense<0.000000e+00> : vector<8xf32>
    %63 = vector.multi_reduction <add>, %62, %cst_27 [1] : vector<8x8xf32> to vector<8xf32>
    %64 = vector.shape_cast %63 : vector<8xf32> to vector<8x1xf32>
    %65 = tpu.reciprocal %64 {approx = true} : vector<8x1xf32> -> vector<8x1xf32>
    %66 = vector.broadcast %65 : vector<8x1xf32> to vector<8x8xf32>
    %67 = arith.mulf %62, %66 : vector<8x8xf32>
    %cst_28 = arith.constant dense<0.000000e+00> : vector<8x8xf32>
    %68 = tpu.matmul %67, %56, %cst_28 {dimension_numbers = #tpu.dot_dimension_numbers<[1], [0], [0], [1], [0, 0, 1, 1], [], []>} : vector<8x8xf32>, vector<8x8xf32>, vector<8x8xf32> -> vector<8x8xf32>
    %c0_29 = arith.constant 0 : index
    %c8 = arith.constant 8 : index
    %69 = vector.load %arg10[%c0_29, %c8] : memref<8x16xf32, #tpu.memory_space<vmem>>, vector<8x8xf32>
    tpu.vector_store %arg10[%c0_29, %c8], %68 {strides = array<i32>} : memref<8x16xf32, #tpu.memory_space<vmem>>, vector<8x8xf32>,
    %c0_30 = arith.constant 0 : index
    %c0_31 = arith.constant 0 : index
    %70 = vector.load %arg10[%c0_30, %c0_31] : memref<8x16xf32, #tpu.memory_space<vmem>>, vector<8x16xf32>
    %c0_32 = arith.constant 0 : index
    %c0_33 = arith.constant 0 : index
    %c0_34 = arith.constant 0 : index
    %71 = vector.load %arg7[%c0_32, %c0_33, %c0_34] : memref<1x16x32xf32, #tpu.memory_space<vmem>>, vector<1x16x32xf32>
    %72 = vector.shape_cast %71 : vector<1x16x32xf32> to vector<16x32xf32>
    %cst_35 = arith.constant dense<0.000000e+00> : vector<8x32xf32>
    %73 = tpu.matmul %70, %72, %cst_35 {dimension_numbers = #tpu.dot_dimension_numbers<[1], [0], [0], [1], [0, 0, 1, 1], [], []>} : vector<8x16xf32>, vector<16x32xf32>, vector<8x32xf32> -> vector<8x32xf32>
    %c0_i32 = arith.constant 0 : i32
    %74 = arith.cmpi eq, %arg1, %c0_i32 : i32
    %75 = arith.extui %74 : i1 to i32
    %c0_i32_36 = arith.constant 0 : i32
    %76 = arith.cmpi ne, %75, %c0_i32_36 : i32
    scf.if %76 {
      %80 = arith.addf %1, %73 : vector<8x32xf32>
      %c0_39 = arith.constant 0 : index
      %c0_40 = arith.constant 0 : index
      %81 = vector.load %arg8[%c0_39, %c0_40] : memref<1x32xf32, #tpu.memory_space<vmem>>, vector<1x32xf32>
      %82 = vector.broadcast %81 : vector<1x32xf32> to vector<8x32xf32>
      %83 = arith.addf %80, %82 : vector<8x32xf32>
      %c0_41 = arith.constant 0 : index
      %c0_42 = arith.constant 0 : index
      %c0_43 = arith.constant 0 : index
      %84 = vector.load %arg9[%c0_41, %c0_42, %c0_43] : memref<1x8x32xf32, #tpu.memory_space<vmem>>, vector<1x8x32xf32>
      %85 = vector.shape_cast %84 : vector<1x8x32xf32> to vector<8x32xf32>
      %86 = vector.shape_cast %83 : vector<8x32xf32> to vector<1x8x32xf32>
      tpu.vector_store %arg9[%c0_41, %c0_42, %c0_43], %86 {strides = array<i32>} : memref<1x8x32xf32, #tpu.memory_space<vmem>>, vector<1x8x32xf32>,
    } else {
    }
    %c0_i32_37 = arith.constant 0 : i32
    %77 = arith.cmpi ne, %arg1, %c0_i32_37 : i32
    %78 = arith.extui %77 : i1 to i32
    %c0_i32_38 = arith.constant 0 : i32
    %79 = arith.cmpi ne, %78, %c0_i32_38 : i32
    scf.if %79 {
      %c0_39 = arith.constant 0 : index
      %c0_40 = arith.constant 0 : index
      %c0_41 = arith.constant 0 : index
      %80 = vector.load %arg9[%c0_39, %c0_40, %c0_41] : memref<1x8x32xf32, #tpu.memory_space<vmem>>, vector<1x8x32xf32>
      %81 = vector.shape_cast %80 : vector<1x8x32xf32> to vector<8x32xf32>
      %82 = vector.shape_cast %73 : vector<8x32xf32> to vector<1x8x32xf32>
      tpu.vector_store %arg9[%c0_39, %c0_40, %c0_41], %82 {strides = array<i32>} : memref<1x8x32xf32, #tpu.memory_space<vmem>>, vector<1x8x32xf32>,
    } else {
    }
    return
  }
  func.func @transform_0(%arg0: i32, %arg1: i32) -> (i32, i32, i32) {
    %c0_i32 = arith.constant 0 : i32
    %c0_i32_0 = arith.constant 0 : i32
    %c0_i32_1 = arith.constant 0 : i32
    return %arg0, %c0_i32, %c0_i32_0 : i32, i32, i32
  }
  func.func @transform_1(%arg0: i32, %arg1: i32) -> (i32, i32) {
    %c0_i32 = arith.constant 0 : i32
    %c0_i32_0 = arith.constant 0 : i32
    %c0_i32_1 = arith.constant 0 : i32
    return %c0_i32, %c0_i32_0 : i32, i32
  }
  func.func @transform_2(%arg0: i32, %arg1: i32) -> (i32, i32) {
    %c0_i32 = arith.constant 0 : i32
    %c0_i32_0 = arith.constant 0 : i32
    %c0_i32_1 = arith.constant 0 : i32
    return %c0_i32, %c0_i32_0 : i32, i32
  }
  func.func @transform_3(%arg0: i32, %arg1: i32) -> (i32, i32, i32) {
    %c0_i32 = arith.constant 0 : i32
    %c0_i32_0 = arith.constant 0 : i32
    %c0_i32_1 = arith.constant 0 : i32
    return %arg1, %c0_i32, %c0_i32_0 : i32, i32, i32
  }
  func.func @transform_4(%arg0: i32, %arg1: i32) -> (i32, i32, i32) {
    %c0_i32 = arith.constant 0 : i32
    %c0_i32_0 = arith.constant 0 : i32
    %c0_i32_1 = arith.constant 0 : i32
    return %arg1, %c0_i32, %c0_i32_0 : i32, i32, i32
  }
  func.func @transform_5(%arg0: i32, %arg1: i32) -> (i32, i32, i32) {
    %c0_i32 = arith.constant 0 : i32
    %c0_i32_0 = arith.constant 0 : i32
    %c0_i32_1 = arith.constant 0 : i32
    return %arg1, %c0_i32, %c0_i32_0 : i32, i32, i32
  }
  func.func @transform_6(%arg0: i32, %arg1: i32) -> (i32, i32) {
    %c0_i32 = arith.constant 0 : i32
    %c0_i32_0 = arith.constant 0 : i32
    %c0_i32_1 = arith.constant 0 : i32
    return %c0_i32, %c0_i32_0 : i32, i32
  }
  func.func @transform_7(%arg0: i32, %arg1: i32) -> (i32, i32, i32) {
    %c2_i32 = arith.constant 2 : i32
    %0 = arith.muli %arg1, %c2_i32 : i32
    %1 = arith.addi %0, %arg0 : i32
    %c0_i32 = arith.constant 0 : i32
    %c0_i32_0 = arith.constant 0 : i32
    %c0_i32_1 = arith.constant 0 : i32
    return %1, %c0_i32, %c0_i32_0 : i32, i32, i32
  }
}

module attributes {stable_mosaic.version = 11 : i64} {
  func.func @attn_group_kernel(%arg0: i32, %arg1: i32, %arg2: memref<1x8x32xf32, #tpu.memory_space<vmem>>, %arg3: memref<1x32xf32, #tpu.memory_space<vmem>>, %arg4: memref<1x32xf32, #tpu.memory_space<vmem>>, %arg5: memref<1x32x48xf32, #tpu.memory_space<vmem>>, %arg6: memref<1x1x48xf32, #tpu.memory_space<vmem>>, %arg7: memref<1x16x32xf32, #tpu.memory_space<vmem>>, %arg8: memref<1x32xf32, #tpu.memory_space<vmem>>, %arg9: memref<1x8x32xf32, #tpu.memory_space<vmem>>, %arg10: memref<8x16xf32, #tpu.memory_space<vmem>>) attributes {dimension_semantics = [#tpu.dimension_semantics<parallel>, #tpu.dimension_semantics<parallel>], iteration_bounds = array<i64: 2, 2>, scalar_prefetch = 0 : i64, scratch_operands = 1 : i64, tpu.core_type = #tpu.core_type<tc>, window_params = [{transform_indices = @transform_0, window_bounds = array<i64: 1, 8, 32>}, {pipeline_mode = #tpu.pipeline_mode<synchronous>, transform_indices = @transform_1, window_bounds = array<i64: 1, 32>}, {pipeline_mode = #tpu.pipeline_mode<synchronous>, transform_indices = @transform_2, window_bounds = array<i64: 1, 32>}, {transform_indices = @transform_3, window_bounds = array<i64: 1, 32, 48>}, {transform_indices = @transform_4, window_bounds = array<i64: 1, 1, 48>}, {transform_indices = @transform_5, window_bounds = array<i64: 1, 16, 32>}, {pipeline_mode = #tpu.pipeline_mode<synchronous>, transform_indices = @transform_6, window_bounds = array<i64: 1, 32>}, {transform_indices = @transform_7, window_bounds = array<i64: 1, 8, 32>}]} {
    %c0 = arith.constant 0 : index
    %c0_0 = arith.constant 0 : index
    %c0_1 = arith.constant 0 : index
    %0 = vector.load %arg2[%c0, %c0_0, %c0_1] : memref<1x8x32xf32, #tpu.memory_space<vmem>>, vector<1x8x32xf32>
    %1 = vector.shape_cast %0 : vector<1x8x32xf32> to vector<8x32xf32>
    %c0_2 = arith.constant 0 : index
    %c0_3 = arith.constant 0 : index
    %2 = vector.load %arg3[%c0_2, %c0_3] : memref<1x32xf32, #tpu.memory_space<vmem>>, vector<1x32xf32>
    %c0_4 = arith.constant 0 : index
    %c0_5 = arith.constant 0 : index
    %3 = vector.load %arg4[%c0_4, %c0_5] : memref<1x32xf32, #tpu.memory_space<vmem>>, vector<1x32xf32>
    %cst = arith.constant dense<0.000000e+00> : vector<8xf32>
    %4 = vector.multi_reduction <add>, %1, %cst [1] : vector<8x32xf32> to vector<8xf32>
    %5 = vector.shape_cast %4 : vector<8xf32> to vector<8x1xf32>
    %cst_6 = arith.constant 3.200000e+01 : f32
    %6 = vector.broadcast %cst_6 : f32 to vector<8x1xf32>
    %7 = arith.divf %5, %6 : vector<8x1xf32>
    %8 = vector.broadcast %7 : vector<8x1xf32> to vector<8x32xf32>
    %9 = arith.subf %1, %8 : vector<8x32xf32>
    %10 = arith.mulf %9, %9 : vector<8x32xf32>
    %cst_7 = arith.constant dense<0.000000e+00> : vector<8xf32>
    %11 = vector.multi_reduction <add>, %10, %cst_7 [1] : vector<8x32xf32> to vector<8xf32>
    %12 = vector.shape_cast %11 : vector<8xf32> to vector<8x1xf32>
    %cst_8 = arith.constant 3.200000e+01 : f32
    %13 = vector.broadcast %cst_8 : f32 to vector<8x1xf32>
    %14 = arith.divf %12, %13 : vector<8x1xf32>
    %cst_9 = arith.constant 9.99999974E-6 : f32
    %15 = vector.broadcast %cst_9 : f32 to vector<8x1xf32>
    %16 = arith.addf %14, %15 : vector<8x1xf32>
    %17 = math.rsqrt %16 : vector<8x1xf32>
    %18 = vector.broadcast %17 : vector<8x1xf32> to vector<8x32xf32>
    %19 = arith.mulf %9, %18 : vector<8x32xf32>
    %20 = vector.broadcast %2 : vector<1x32xf32> to vector<8x32xf32>
    %21 = arith.mulf %19, %20 : vector<8x32xf32>
    %22 = vector.broadcast %3 : vector<1x32xf32> to vector<8x32xf32>
    %23 = arith.addf %21, %22 : vector<8x32xf32>
    %c0_10 = arith.constant 0 : index
    %c0_11 = arith.constant 0 : index
    %c0_12 = arith.constant 0 : index
    %24 = vector.load %arg5[%c0_10, %c0_11, %c0_12] : memref<1x32x48xf32, #tpu.memory_space<vmem>>, vector<1x32x48xf32>
    %25 = vector.shape_cast %24 : vector<1x32x48xf32> to vector<32x48xf32>
    %cst_13 = arith.constant dense<0.000000e+00> : vector<8x48xf32>
    %26 = tpu.matmul %23, %25, %cst_13 {dimension_numbers = #tpu.dot_dimension_numbers<[1], [0], [0], [1], [0, 0, 1, 1], [], []>} : vector<8x32xf32>, vector<32x48xf32>, vector<8x48xf32> -> vector<8x48xf32>
    %c0_14 = arith.constant 0 : index
    %c0_15 = arith.constant 0 : index
    %c0_16 = arith.constant 0 : index
    %27 = vector.load %arg6[%c0_14, %c0_15, %c0_16] : memref<1x1x48xf32, #tpu.memory_space<vmem>>, vector<1x1x48xf32>
    %28 = vector.shape_cast %27 : vector<1x1x48xf32> to vector<1x48xf32>
    %29 = vector.broadcast %28 : vector<1x48xf32> to vector<8x48xf32>
    %30 = arith.addf %26, %29 : vector<8x48xf32>
    %31 = vector.extract_strided_slice %30 {offsets = [0, 0], sizes = [8, 16], strides = [1, 1]} : vector<8x48xf32> to vector<8x16xf32>
    %32 = vector.extract_strided_slice %30 {offsets = [0, 16], sizes = [8, 16], strides = [1, 1]} : vector<8x48xf32> to vector<8x16xf32>
    %33 = vector.extract_strided_slice %30 {offsets = [0, 32], sizes = [8, 16], strides = [1, 1]} : vector<8x48xf32> to vector<8x16xf32>
    %34 = vector.extract_strided_slice %31 {offsets = [0, 0], sizes = [8, 8], strides = [1, 1]} : vector<8x16xf32> to vector<8x8xf32>
    %cst_17 = arith.constant 0.353553385 : f32
    %35 = vector.broadcast %cst_17 : f32 to vector<8x8xf32>
    %36 = arith.mulf %34, %35 : vector<8x8xf32>
    %37 = vector.extract_strided_slice %32 {offsets = [0, 0], sizes = [8, 8], strides = [1, 1]} : vector<8x16xf32> to vector<8x8xf32>
    %38 = vector.extract_strided_slice %33 {offsets = [0, 0], sizes = [8, 8], strides = [1, 1]} : vector<8x16xf32> to vector<8x8xf32>
    %cst_18 = arith.constant dense<0.000000e+00> : vector<8x8xf32>
    %39 = tpu.matmul %36, %37, %cst_18 {dimension_numbers = #tpu.dot_dimension_numbers<[1], [1], [0], [0], [0, 0, 1, 0], [], []>} : vector<8x8xf32>, vector<8x8xf32>, vector<8x8xf32> -> vector<8x8xf32>
    %cst_19 = arith.constant dense<0xFF800000> : vector<8xf32>
    %40 = vector.multi_reduction <maximumf>, %39, %cst_19 [1] : vector<8x8xf32> to vector<8xf32>
    %41 = vector.shape_cast %40 : vector<8xf32> to vector<8x1xf32>
    %42 = vector.broadcast %41 : vector<8x1xf32> to vector<8x8xf32>
    %43 = arith.subf %39, %42 : vector<8x8xf32>
    %44 = math.exp %43 : vector<8x8xf32>
    %cst_20 = arith.constant dense<0.000000e+00> : vector<8xf32>
    %45 = vector.multi_reduction <add>, %44, %cst_20 [1] : vector<8x8xf32> to vector<8xf32>
    %46 = vector.shape_cast %45 : vector<8xf32> to vector<8x1xf32>
    %47 = tpu.reciprocal %46 {approx = true} : vector<8x1xf32> -> vector<8x1xf32>
    %48 = vector.broadcast %47 : vector<8x1xf32> to vector<8x8xf32>
    %49 = arith.mulf %44, %48 : vector<8x8xf32>
    %cst_21 = arith.constant dense<0.000000e+00> : vector<8x8xf32>
    %50 = tpu.matmul %49, %38, %cst_21 {dimension_numbers = #tpu.dot_dimension_numbers<[1], [0], [0], [1], [0, 0, 1, 1], [], []>} : vector<8x8xf32>, vector<8x8xf32>, vector<8x8xf32> -> vector<8x8xf32>
    %c0_22 = arith.constant 0 : index
    %c0_23 = arith.constant 0 : index
    %51 = vector.load %arg10[%c0_22, %c0_23] : memref<8x16xf32, #tpu.memory_space<vmem>>, vector<8x8xf32>
    tpu.vector_store %arg10[%c0_22, %c0_23], %50 {strides = array<i32>} : memref<8x16xf32, #tpu.memory_space<vmem>>, vector<8x8xf32>,
    %52 = vector.extract_strided_slice %31 {offsets = [0, 8], sizes = [8, 8], strides = [1, 1]} : vector<8x16xf32> to vector<8x8xf32>
    %cst_24 = arith.constant 0.353553385 : f32
    %53 = vector.broadcast %cst_24 : f32 to vector<8x8xf32>
    %54 = arith.mulf %52, %53 : vector<8x8xf32>
    %55 = vector.extract_strided_slice %32 {offsets = [0, 8], sizes = [8, 8], strides = [1, 1]} : vector<8x16xf32> to vector<8x8xf32>
    %56 = vector.extract_strided_slice %33 {offsets = [0, 8], sizes = [8, 8], strides = [1, 1]} : vector<8x16xf32> to vector<8x8xf32>
    %cst_25 = arith.constant dense<0.000000e+00> : vector<8x8xf32>
    %57 = tpu.matmul %54, %55, %cst_25 {dimension_numbers = #tpu.dot_dimension_numbers<[1], [1], [0], [0], [0, 0, 1, 0], [], []>} : vector<8x8xf32>, vector<8x8xf32>, vector<8x8xf32> -> vector<8x8xf32>
    %cst_26 = arith.constant dense<0xFF800000> : vector<8xf32>
    %58 = vector.multi_reduction <maximumf>, %57, %cst_26 [1] : vector<8x8xf32> to vector<8xf32>
    %59 = vector.shape_cast %58 : vector<8xf32> to vector<8x1xf32>
    %60 = vector.broadcast %59 : vector<8x1xf32> to vector<8x8xf32>
    %61 = arith.subf %57, %60 : vector<8x8xf32>
    %62 = math.exp %61 : vector<8x8xf32>
    %cst_27 = arith.constant dense<0.000000e+00> : vector<8xf32>
    %63 = vector.multi_reduction <add>, %62, %cst_27 [1] : vector<8x8xf32> to vector<8xf32>
    %64 = vector.shape_cast %63 : vector<8xf32> to vector<8x1xf32>
    %65 = tpu.reciprocal %64 {approx = true} : vector<8x1xf32> -> vector<8x1xf32>
    %66 = vector.broadcast %65 : vector<8x1xf32> to vector<8x8xf32>
    %67 = arith.mulf %62, %66 : vector<8x8xf32>
    %cst_28 = arith.constant dense<0.000000e+00> : vector<8x8xf32>
    %68 = tpu.matmul %67, %56, %cst_28 {dimension_numbers = #tpu.dot_dimension_numbers<[1], [0], [0], [1], [0, 0, 1, 1], [], []>} : vector<8x8xf32>, vector<8x8xf32>, vector<8x8xf32> -> vector<8x8xf32>
    %c0_29 = arith.constant 0 : index
    %c8 = arith.constant 8 : index
    %69 = vector.load %arg10[%c0_29, %c8] : memref<8x16xf32, #tpu.memory_space<vmem>>, vector<8x8xf32>
    tpu.vector_store %arg10[%c0_29, %c8], %68 {strides = array<i32>} : memref<8x16xf32, #tpu.memory_space<vmem>>, vector<8x8xf32>,
    %c0_30 = arith.constant 0 : index
    %c0_31 = arith.constant 0 : index
    %70 = vector.load %arg10[%c0_30, %c0_31] : memref<8x16xf32, #tpu.memory_space<vmem>>, vector<8x16xf32>
    %c0_32 = arith.constant 0 : index
    %c0_33 = arith.constant 0 : index
    %c0_34 = arith.constant 0 : index
    %71 = vector.load %arg7[%c0_32, %c0_33, %c0_34] : memref<1x16x32xf32, #tpu.memory_space<vmem>>, vector<1x16x32xf32>
    %72 = vector.shape_cast %71 : vector<1x16x32xf32> to vector<16x32xf32>
    %cst_35 = arith.constant dense<0.000000e+00> : vector<8x32xf32>
    %73 = tpu.matmul %70, %72, %cst_35 {dimension_numbers = #tpu.dot_dimension_numbers<[1], [0], [0], [1], [0, 0, 1, 1], [], []>} : vector<8x16xf32>, vector<16x32xf32>, vector<8x32xf32> -> vector<8x32xf32>
    %c0_i32 = arith.constant 0 : i32
    %74 = arith.cmpi eq, %arg1, %c0_i32 : i32
    %75 = arith.extui %74 : i1 to i32
    %c0_i32_36 = arith.constant 0 : i32
    %76 = arith.cmpi ne, %75, %c0_i32_36 : i32
    scf.if %76 {
      %80 = arith.addf %1, %73 : vector<8x32xf32>
      %c0_39 = arith.constant 0 : index
      %c0_40 = arith.constant 0 : index
      %81 = vector.load %arg8[%c0_39, %c0_40] : memref<1x32xf32, #tpu.memory_space<vmem>>, vector<1x32xf32>
      %82 = vector.broadcast %81 : vector<1x32xf32> to vector<8x32xf32>
      %83 = arith.addf %80, %82 : vector<8x32xf32>
      %c0_41 = arith.constant 0 : index
      %c0_42 = arith.constant 0 : index
      %c0_43 = arith.constant 0 : index
      %84 = vector.load %arg9[%c0_41, %c0_42, %c0_43] : memref<1x8x32xf32, #tpu.memory_space<vmem>>, vector<1x8x32xf32>
      %85 = vector.shape_cast %84 : vector<1x8x32xf32> to vector<8x32xf32>
      %86 = vector.shape_cast %83 : vector<8x32xf32> to vector<1x8x32xf32>
      tpu.vector_store %arg9[%c0_41, %c0_42, %c0_43], %86 {strides = array<i32>} : memref<1x8x32xf32, #tpu.memory_space<vmem>>, vector<1x8x32xf32>,
    } else {
    }
    %c0_i32_37 = arith.constant 0 : i32
    %77 = arith.cmpi ne, %arg1, %c0_i32_37 : i32
    %78 = arith.extui %77 : i1 to i32
    %c0_i32_38 = arith.constant 0 : i32
    %79 = arith.cmpi ne, %78, %c0_i32_38 : i32
    scf.if %79 {
      %c0_39 = arith.constant 0 : index
      %c0_40 = arith.constant 0 : index
      %c0_41 = arith.constant 0 : index
      %80 = vector.load %arg9[%c0_39, %c0_40, %c0_41] : memref<1x8x32xf32, #tpu.memory_space<vmem>>, vector<1x8x32xf32>
      %81 = vector.shape_cast %80 : vector<1x8x32xf32> to vector<8x32xf32>
      %82 = vector.shape_cast %73 : vector<8x32xf32> to vector<1x8x32xf32>
      tpu.vector_store %arg9[%c0_39, %c0_40, %c0_41], %82 {strides = array<i32>} : memref<1x8x32xf32, #tpu.memory_space<vmem>>, vector<1x8x32xf32>,
    } else {
    }
    return
  }
  func.func @transform_0(%arg0: i32, %arg1: i32) -> (i32, i32, i32) {
    %c0_i32 = arith.constant 0 : i32
    %c0_i32_0 = arith.constant 0 : i32
    %c0_i32_1 = arith.constant 0 : i32
    return %arg0, %c0_i32, %c0_i32_0 : i32, i32, i32
  }
  func.func @transform_1(%arg0: i32, %arg1: i32) -> (i32, i32) {
    %c0_i32 = arith.constant 0 : i32
    %c0_i32_0 = arith.constant 0 : i32
    %c0_i32_1 = arith.constant 0 : i32
    return %c0_i32, %c0_i32_0 : i32, i32
  }
  func.func @transform_2(%arg0: i32, %arg1: i32) -> (i32, i32) {
    %c0_i32 = arith.constant 0 : i32
    %c0_i32_0 = arith.constant 0 : i32
    %c0_i32_1 = arith.constant 0 : i32
    return %c0_i32, %c0_i32_0 : i32, i32
  }
  func.func @transform_3(%arg0: i32, %arg1: i32) -> (i32, i32, i32) {
    %c0_i32 = arith.constant 0 : i32
    %c0_i32_0 = arith.constant 0 : i32
    %c0_i32_1 = arith.constant 0 : i32
    return %arg1, %c0_i32, %c0_i32_0 : i32, i32, i32
  }
  func.func @transform_4(%arg0: i32, %arg1: i32) -> (i32, i32, i32) {
    %c0_i32 = arith.constant 0 : i32
    %c0_i32_0 = arith.constant 0 : i32
    %c0_i32_1 = arith.constant 0 : i32
    return %arg1, %c0_i32, %c0_i32_0 : i32, i32, i32
  }
  func.func @transform_5(%arg0: i32, %arg1: i32) -> (i32, i32, i32) {
    %c0_i32 = arith.constant 0 : i32
    %c0_i32_0 = arith.constant 0 : i32
    %c0_i32_1 = arith.constant 0 : i32
    return %arg1, %c0_i32, %c0_i32_0 : i32, i32, i32
  }
  func.func @transform_6(%arg0: i32, %arg1: i32) -> (i32, i32) {
    %c0_i32 = arith.constant 0 : i32
    %c0_i32_0 = arith.constant 0 : i32
    %c0_i32_1 = arith.constant 0 : i32
    return %c0_i32, %c0_i32_0 : i32, i32
  }
  func.func @transform_7(%arg0: i32, %arg1: i32) -> (i32, i32, i32) {
    %c2_i32 = arith.constant 2 : i32
    %0 = arith.muli %arg1, %c2_i32 : i32
    %1 = arith.addi %0, %arg0 : i32
    %c0_i32 = arith.constant 0 : i32
    %c0_i32_0 = arith.constant 0 : i32
    %c0_i32_1 = arith.constant 0 : i32
    return %1, %c0_i32, %c0_i32_0 : i32, i32, i32
  }
}

</mosaic_0001>

<llo_original>
// kernel: tpu_custom_call.1
$region0: #{tpu_custom_call.1}
  #allocation0 [shape = 'u32[]', space=smem, size = 0x4, offset = 0x4, fixed_abs, tag = 'smem constant byte address 0x4 - core index']
  #allocation1 [shape = 'u32[144,128]{1,0:T(1,128)}', space=vmem, size = 0x12000, scoped, tag = 'internal scratch']
  #allocation2 [shape = 'f32[8,16]{1,0:T(8,128)}', space=vmem, size = 0x1000, scoped, tag = 'scratch operand']
  %s0 = inlined_call_operand.hbm [shape: f32[2,8,32], index: 0, kind: input, shape index: {}]
  %s1 = inlined_call_operand.vmem [shape: f32[1,32], index: 1, kind: input, shape index: {}]
  %s2 = inlined_call_operand.vmem [shape: f32[1,32], index: 2, kind: input, shape index: {}]
  %s3 = inlined_call_operand.hbm [shape: f32[2,32,48], index: 3, kind: input, shape index: {}]
  %s4 = inlined_call_operand.vmem [shape: f32[2,1,48], index: 4, kind: input, shape index: {}]
  %s5 = inlined_call_operand.hbm [shape: f32[2,16,32], index: 5, kind: input, shape index: {}]
  %s6 = inlined_call_operand.vmem [shape: f32[1,32], index: 6, kind: input, shape index: {}]
  %s7 = inlined_call_operand.hbm [shape: f32[4,8,32], index: 7, kind: output, shape index: {}]
  %s8 = sld [smem:[#allocation0]]
  $region81: #{tpu_custom_call.1} parent=0
    _
  %s10 = ssub.s32 1, %s8
  %s11 = scalar_select 0, %s10, %s8
  $region1: #{tpu_custom_call.1} parent=0
    #allocation3 [shape = 'u8[8192]{0}', space=vmem, size = 0x2000, scoped, tag = 'input window, operand 0']
    #allocation4 [shape = 's32[2]{0}', space=sflag, size = 0x8, scoped, tag = 'scoped memory for tpu_custom_call.1']
    #allocation5 [shape = 's32[2]{0}', space=sflag, size = 0x8, scoped, tag = 'scoped memory for tpu_custom_call.1']
    #allocation6 [shape = 'u8[32768]{0}', space=vmem, size = 0x8000, scoped, tag = 'input window, operand 3']
    #allocation7 [shape = 's32[2]{0}', space=sflag, size = 0x8, scoped, tag = 'scoped memory for tpu_custom_call.1']
    #allocation8 [shape = 'u8[16384]{0}', space=vmem, size = 0x4000, scoped, tag = 'input window, operand 5']
    #allocation9 [shape = 'u8[8192]{0}', space=vmem, size = 0x2000, scoped, tag = 'output window, operand 0']
    %12 = vsyncpa [#allocation4], 0
    %s13 = scalar_lea.sflag [#allocation4], 1
    %14 = vsyncpa %s13, 0
    %15 = vsyncpa [#allocation7], 0
    %s16 = scalar_lea.sflag [#allocation7], 1
    %17 = vsyncpa %s16, 0
    %18 = vsyncpa [#allocation5], 0
    %s19 = scalar_lea.sflag [#allocation5], 1
    %20 = vsyncpa %s19, 0
    loop: start=0, step=1, limit=6
    $region2: #{tpu_custom_call.1} parent=1 // loop_pre_header
      _
    $region3: #{tpu_custom_call.1} parent=1 // loop_header
      %s22 = sphi 0, %s26
      %p23 = scmp.ge.s32.totalorder %s22, 6
      %s29 = sphi 0, %s41
      %s30 = sphi 0, %s37
      %s31 = sphi 0, %s29
      %s32 = sphi 0, %s30
      %s33 = sphi 0, %s31
      %s34 = sphi 0, %s32
      %s44 = sphi 0, %s46
      %s47 = sphi 0, %s44
      %s48 = sphi 0, %s47
      %s64 = sphi 0, %s48
      %s68 = sphi 0, %s68
      %s70 = sphi 0, %s68
      %s71 = sphi 0, %s70
      %s85 = sphi 0, %s71
      %s89 = sphi 0, %s89
      %s91 = sphi 0, %s89
      %s92 = sphi 0, %s91
      %s106 = sphi 0, %s92
      %s112 = sphi 0, %s114
      %s115 = sphi 0, %s112
      %s116 = sphi 0, %s115
      %s132 = sphi 0, %s116
      %s138 = sphi 0, %s140
      %s141 = sphi 0, %s138
      %s142 = sphi 0, %s141
      %s158 = sphi 0, %s142
      %s164 = sphi 0, %s166
      %s167 = sphi 0, %s164
      %s168 = sphi 0, %s167
      %s184 = sphi 0, %s168
      %s188 = sphi 0, %s188
      %s190 = sphi 0, %s188
      %s191 = sphi 0, %s190
      %s205 = sphi 0, %s191
      %s215 = sphi 0, %s217
      %s218 = sphi 0, %s215
      %s219 = sphi 0, %s218
      %s235 = sphi 0, %s219
    $region4: #{tpu_custom_call.1} parent=1 // loop_header_branch
      %25 = sbr.rel (%p23) target = $region8
    $region5: #{tpu_custom_call.1} parent=1 // loop_body
      %s27 = ssub.s32 %s22, 1
      %s28 = ssub.s32 %s22, 2
      %s35 = sadd.s32 1, %s30
      %p36 = scmp.ge.s32.totalorder %s35, 2
      %s37 = scalar_select %p36, 0, %s35
      %s38 = sadd.s32 1, %s29
      %s39 = scalar_select %p36, %s38, %s29
      %p40 = scmp.ge.s32.totalorder %s39, 2
      %s41 = scalar_select %p40, 0, %s39
      %s42 = ssub.s32 %s29, %s41
      %p43 = scmp.eq.s32.totalorder %s42, 0
      %s45 = sadd.s32 %s44, 1
      %s46 = scalar_select %p43, %s44, %s45
      %p49 = pneg %p43
      %p50 = scmp.eq.s32.totalorder %s22, 3
      %p51 = por %p49, %p50
      %p52 = scmp.ne.s32.totalorder %s44, %s47
      %p53 = scmp.eq.s32.totalorder %s22, 0
      %p54 = por %p52, %p53
      %p55 = scmp.ne.s32.totalorder %s44, %s47
      %p56 = scmp.eq.s32.totalorder %s27, 3
      %p57 = por %p55, %p56
      %p58 = scmp.ne.s32.totalorder %s47, %s48
      %p59 = scmp.eq.s32.totalorder %s27, 0
      %p60 = por %p58, %p59
      %p61 = scmp.ne.s32.totalorder %s47, %s48
      %p62 = scmp.eq.s32.totalorder %s28, 3
      %p63 = por %p61, %p62
      %p65 = scmp.ne.s32.totalorder %s48, %s64
      %p66 = scmp.eq.s32.totalorder %s28, 0
      %p67 = por %p65, %p66
      %s69 = sadd.s32 %s68, 1
      %p72 = scmp.eq.s32.totalorder %s22, 3
      %p73 = scmp.ne.s32.totalorder %s68, %s70
      %p74 = scmp.eq.s32.totalorder %s22, 0
      %p75 = por %p73, %p74
      %p76 = scmp.ne.s32.totalorder %s68, %s70
      %p77 = scmp.eq.s32.totalorder %s27, 3
      %p78 = por %p76, %p77
      %p79 = scmp.ne.s32.totalorder %s70, %s71
      %p80 = scmp.eq.s32.totalorder %s27, 0
      %p81 = por %p79, %p80
      %p82 = scmp.ne.s32.totalorder %s70, %s71
      %p83 = scmp.eq.s32.totalorder %s28, 3
      %p84 = por %p82, %p83
      %p86 = scmp.ne.s32.totalorder %s71, %s85
      %p87 = scmp.eq.s32.totalorder %s28, 0
      %p88 = por %p86, %p87
      %s90 = sadd.s32 %s89, 1
      %p93 = scmp.eq.s32.totalorder %s22, 3
      %p94 = scmp.ne.s32.totalorder %s89, %s91
      %p95 = scmp.eq.s32.totalorder %s22, 0
      %p96 = por %p94, %p95
      %p97 = scmp.ne.s32.totalorder %s89, %s91
      %p98 = scmp.eq.s32.totalorder %s27, 3
      %p99 = por %p97, %p98
      %p100 = scmp.ne.s32.totalorder %s91, %s92
      %p101 = scmp.eq.s32.totalorder %s27, 0
      %p102 = por %p100, %p101
      %p103 = scmp.ne.s32.totalorder %s91, %s92
      %p104 = scmp.eq.s32.totalorder %s28, 3
      %p105 = por %p103, %p104
      %p107 = scmp.ne.s32.totalorder %s92, %s106
      %p108 = scmp.eq.s32.totalorder %s28, 0
      %p109 = por %p107, %p108
      %s110 = ssub.s32 %s30, %s37
      %p111 = scmp.eq.s32.totalorder %s110, 0
      %s113 = sadd.s32 %s112, 1
      %s114 = scalar_select %p111, %s112, %s113
      %p117 = pneg %p111
      %p118 = scmp.eq.s32.totalorder %s22, 3
      %p119 = por %p117, %p118
      %p120 = scmp.ne.s32.totalorder %s112, %s115
      %p121 = scmp.eq.s32.totalorder %s22, 0
      %p122 = por %p120, %p121
      %p123 = scmp.ne.s32.totalorder %s112, %s115
      %p124 = scmp.eq.s32.totalorder %s27, 3
      %p125 = por %p123, %p124
      %p126 = scmp.ne.s32.totalorder %s115, %s116
      %p127 = scmp.eq.s32.totalorder %s27, 0
      %p128 = por %p126, %p127
      %p129 = scmp.ne.s32.totalorder %s115, %s116
      %p130 = scmp.eq.s32.totalorder %s28, 3
      %p131 = por %p129, %p130
      %p133 = scmp.ne.s32.totalorder %s116, %s132
      %p134 = scmp.eq.s32.totalorder %s28, 0
      %p135 = por %p133, %p134
      %s136 = ssub.s32 %s30, %s37
      %p137 = scmp.eq.s32.totalorder %s136, 0
      %s139 = sadd.s32 %s138, 1
      %s140 = scalar_select %p137, %s138, %s139
      %p143 = pneg %p137
      %p144 = scmp.eq.s32.totalorder %s22, 3
      %p145 = por %p143, %p144
      %p146 = scmp.ne.s32.totalorder %s138, %s141
      %p147 = scmp.eq.s32.totalorder %s22, 0
      %p148 = por %p146, %p147
      %p149 = scmp.ne.s32.totalorder %s138, %s141
      %p150 = scmp.eq.s32.totalorder %s27, 3
      %p151 = por %p149, %p150
      %p152 = scmp.ne.s32.totalorder %s141, %s142
      %p153 = scmp.eq.s32.totalorder %s27, 0
      %p154 = por %p152, %p153
      %p155 = scmp.ne.s32.totalorder %s141, %s142
      %p156 = scmp.eq.s32.totalorder %s28, 3
      %p157 = por %p155, %p156
      %p159 = scmp.ne.s32.totalorder %s142, %s158
      %p160 = scmp.eq.s32.totalorder %s28, 0
      %p161 = por %p159, %p160
      %s162 = ssub.s32 %s30, %s37
      %p163 = scmp.eq.s32.totalorder %s162, 0
      %s165 = sadd.s32 %s164, 1
      %s166 = scalar_select %p163, %s164, %s165
      %p169 = pneg %p163
      %p170 = scmp.eq.s32.totalorder %s22, 3
      %p171 = por %p169, %p170
      %p172 = scmp.ne.s32.totalorder %s164, %s167
      %p173 = scmp.eq.s32.totalorder %s22, 0
      %p174 = por %p172, %p173
      %p175 = scmp.ne.s32.totalorder %s164, %s167
      %p176 = scmp.eq.s32.totalorder %s27, 3
      %p177 = por %p175, %p176
      %p178 = scmp.ne.s32.totalorder %s167, %s168
      %p179 = scmp.eq.s32.totalorder %s27, 0
      %p180 = por %p178, %p179
      %p181 = scmp.ne.s32.totalorder %s167, %s168
      %p182 = scmp.eq.s32.totalorder %s28, 3
      %p183 = por %p181, %p182
      %p185 = scmp.ne.s32.totalorder %s168, %s184
      %p186 = scmp.eq.s32.totalorder %s28, 0
      %p187 = por %p185, %p186
      %s189 = sadd.s32 %s188, 1
      %p192 = scmp.eq.s32.totalorder %s22, 3
      %p193 = scmp.ne.s32.totalorder %s188, %s190
      %p194 = scmp.eq.s32.totalorder %s22, 0
      %p195 = por %p193, %p194
      %p196 = scmp.ne.s32.totalorder %s188, %s190
      %p197 = scmp.eq.s32.totalorder %s27, 3
      %p198 = por %p196, %p197
      %p199 = scmp.ne.s32.totalorder %s190, %s191
      %p200 = scmp.eq.s32.totalorder %s27, 0
      %p201 = por %p199, %p200
      %p202 = scmp.ne.s32.totalorder %s190, %s191
      %p203 = scmp.eq.s32.totalorder %s28, 3
      %p204 = por %p202, %p203
      %p206 = scmp.ne.s32.totalorder %s191, %s205
      %p207 = scmp.eq.s32.totalorder %s28, 0
      %p208 = por %p206, %p207
      %s209 = smul.u32 %s30, 2
      %s210 = sadd.s32 %s209, %s29
      %s211 = smul.u32 %s37, 2
      %s212 = sadd.s32 %s211, %s41
      %s213 = ssub.s32 %s210, %s212
      %p214 = scmp.eq.s32.totalorder %s213, 0
      %s216 = sadd.s32 %s215, 1
      %s217 = scalar_select %p214, %s215, %s216
      %p220 = pneg %p214
      %p221 = scmp.eq.s32.totalorder %s22, 3
      %p222 = por %p220, %p221
      %p223 = scmp.ne.s32.totalorder %s215, %s218
      %p224 = scmp.eq.s32.totalorder %s22, 0
      %p225 = por %p223, %p224
      %p226 = scmp.ne.s32.totalorder %s215, %s218
      %p227 = scmp.eq.s32.totalorder %s27, 3
      %p228 = por %p226, %p227
      %p229 = scmp.ne.s32.totalorder %s218, %s219
      %p230 = scmp.eq.s32.totalorder %s27, 0
      %p231 = por %p229, %p230
      %p232 = scmp.ne.s32.totalorder %s218, %s219
      %p233 = scmp.eq.s32.totalorder %s28, 3
      %p234 = por %p232, %p233
      %p236 = scmp.ne.s32.totalorder %s219, %s235
      %p237 = scmp.eq.s32.totalorder %s28, 0
      %p238 = por %p236, %p237
      %p239 = scmp.le.s32.totalorder 1, %s22
      %p240 = scmp.lt.s32.totalorder %s22, 5
      %p241 = pnand %p239, %p240
      %p242 = pneg %p241
      // Predicated region
      $region9: #{tpu_custom_call.1} parent=5 // pred_check
        _
      $region10: #{tpu_custom_call.1} parent=5 // pred_check_branch
        %244 = sbr.rel (%p241) target = $region12
      $region11: #{tpu_custom_call.1} parent=5 // pred_region
        %s245 = ssub.s32 %s22, 1
        // Predicated region
        $region13: #{tpu_custom_call.1} parent=11 // pred_check
          %p246 = pneg %p81
        $region14: #{tpu_custom_call.1} parent=11 // pred_check_branch
          %248 = sbr.rel (%p246) target = $region16
        $region15: #{tpu_custom_call.1} parent=11 // pred_region
          _
        $region16: #{tpu_custom_call.1} parent=11 // pred_fallthru
          _
        // Predicated region
        $region17: #{tpu_custom_call.1} parent=11 // pred_check
          %p249 = pneg %p102
        $region18: #{tpu_custom_call.1} parent=11 // pred_check_branch
          %251 = sbr.rel (%p249) target = $region20
        $region19: #{tpu_custom_call.1} parent=11 // pred_region
          _
        $region20: #{tpu_custom_call.1} parent=11 // pred_fallthru
          _
        // Predicated region
        $region21: #{tpu_custom_call.1} parent=11 // pred_check
          %p252 = pneg %p201
        $region22: #{tpu_custom_call.1} parent=11 // pred_check_branch
          %254 = sbr.rel (%p252) target = $region24
        $region23: #{tpu_custom_call.1} parent=11 // pred_region
          _
        $region24: #{tpu_custom_call.1} parent=11 // pred_fallthru
          _
      $region12: #{tpu_custom_call.1} parent=5 // pred_fallthru
        _
      %p255 = scmp.lt.s32.totalorder %s22, 4
      // Predicated region
      $region25: #{tpu_custom_call.1} parent=5 // pred_check
        %p256 = pneg %p255
      $region26: #{tpu_custom_call.1} parent=5 // pred_check_branch
        %258 = sbr.rel (%p256) target = $region28
      $region27: #{tpu_custom_call.1} parent=5 // pred_region
        // Predicated region
        $region29: #{tpu_custom_call.1} parent=27 // pred_check
          %p259 = pneg %p54
        $region30: #{tpu_custom_call.1} parent=27 // pred_check_branch
          %261 = sbr.rel (%p259) target = $region32
        $region31: #{tpu_custom_call.1} parent=27 // pred_region
          %s262 = sand.u32 %s44, 1
          %s263 = scalar_lea.sflag [#allocation4], %s262
          %s264 = sand.u32 %s44, 1
          %s265 = smul.addr %s264, 8
          %s266 = scalar_lea.vmem [#allocation3], %s265
          %s268 = ssub.s32 128, 128
          %269 = vsyncadd %s263, %s268
          %s270 = smul.addr %s29, 128
          %s271 = scalar_lea.hbm %s0, %s270
          %s273 = sshll.u32 %s266, 4
          %s274 = int_to_ptr.vmem [resolvable:$true] %s273
          %276 = dma.hbm_to_vmem [thread:$0]  %s271, 128, %s274, %s263
        $region32: #{tpu_custom_call.1} parent=27 // pred_fallthru
          _
        // Predicated region
        $region33: #{tpu_custom_call.1} parent=27 // pred_check
          %p277 = pneg %p122
        $region34: #{tpu_custom_call.1} parent=27 // pred_check_branch
          %279 = sbr.rel (%p277) target = $region36
        $region35: #{tpu_custom_call.1} parent=27 // pred_region
          %s280 = sand.u32 %s22, 1
          %s281 = scalar_lea.sflag [#allocation7], %s280
          %s282 = sand.u32 %s112, 1
          %s283 = smul.addr %s282, 32
          %s284 = scalar_lea.vmem [#allocation6], %s283
          %s286 = ssub.s32 512, 512
          %287 = vsyncadd %s281, %s286
          %s288 = smul.addr %s30, 4
          %s289 = smul.addr %s288, 128
          %s290 = scalar_lea.hbm %s3, %s289
          %s291 = sshll.u32 %s284, 4
          %s292 = int_to_ptr.vmem [resolvable:$true] %s291
          %297 = dma.hbm_to_vmem [thread:$0]  %s290, 512, %s292, %s281, 128, 128, 8
        $region36: #{tpu_custom_call.1} parent=27 // pred_fallthru
          _
        // Predicated region
        $region37: #{tpu_custom_call.1} parent=27 // pred_check
          %p298 = pneg %p148
        $region38: #{tpu_custom_call.1} parent=27 // pred_check_branch
          %300 = sbr.rel (%p298) target = $region40
        $region39: #{tpu_custom_call.1} parent=27 // pred_region
          %p301 = scmp.lt.s32.totalorder %s30, 1
          %s302 = scalar_select %p301, %s30, 1
          %s303 = scalar_lea.vmem %s4, %s302
        $region40: #{tpu_custom_call.1} parent=27 // pred_fallthru
          _
        // Predicated region
        $region41: #{tpu_custom_call.1} parent=27 // pred_check
          %p304 = pneg %p174
        $region42: #{tpu_custom_call.1} parent=27 // pred_check_branch
          %306 = sbr.rel (%p304) target = $region44
        $region43: #{tpu_custom_call.1} parent=27 // pred_region
          %s307 = sand.u32 %s22, 1
          %s308 = scalar_lea.sflag [#allocation7], %s307
          %s309 = sand.u32 %s164, 1
          %s310 = smul.addr %s309, 16
          %s311 = scalar_lea.vmem [#allocation8], %s310
          %s313 = ssub.s32 256, 256
          %314 = vsyncadd %s308, %s313
          %s315 = smul.addr %s30, 2
          %s316 = smul.addr %s315, 128
          %s317 = scalar_lea.hbm %s5, %s316
          %s318 = sshll.u32 %s311, 4
          %s319 = int_to_ptr.vmem [resolvable:$true] %s318
          %324 = dma.hbm_to_vmem [thread:$0]  %s317, 256, %s319, %s308, 128, 128, 8
        $region44: #{tpu_custom_call.1} parent=27 // pred_fallthru
          _
      $region28: #{tpu_custom_call.1} parent=5 // pred_fallthru
        _
      %p325 = scmp.le.s32.totalorder 1, %s22
      %p326 = scmp.lt.s32.totalorder %s22, 5
      %p327 = pnand %p325, %p326
      %p328 = pneg %p327
      // Predicated region
      $region45: #{tpu_custom_call.1} parent=5 // pred_check
        _
      $region46: #{tpu_custom_call.1} parent=5 // pred_check_branch
        %330 = sbr.rel (%p327) target = $region48
      $region47: #{tpu_custom_call.1} parent=5 // pred_region
        %s331 = ssub.s32 %s22, 1
        %s332 = sand.u32 %s47, 1
        %s333 = scalar_lea.sflag [#allocation4], %s332
        %s334 = sand.u32 %s47, 1
        %s335 = smul.addr %s334, 8
        %s336 = scalar_lea.vmem [#allocation3], %s335
        // Predicated region
        $region49: #{tpu_custom_call.1} parent=47 // pred_check
          %p337 = pneg %p60
        $region50: #{tpu_custom_call.1} parent=47 // pred_check_branch
          %339 = sbr.rel (%p337) target = $region52
        $region51: #{tpu_custom_call.1} parent=47 // pred_region
          %340 = dma.done %s333, 128
        $region52: #{tpu_custom_call.1} parent=47 // pred_fallthru
          _
        %s341 = sand.u32 %s27, 1
        %s342 = scalar_lea.sflag [#allocation7], %s341
        %s343 = sand.u32 %s115, 1
        %s344 = smul.addr %s343, 32
        %s345 = scalar_lea.vmem [#allocation6], %s344
        // Predicated region
        $region53: #{tpu_custom_call.1} parent=47 // pred_check
          %p346 = pneg %p128
        $region54: #{tpu_custom_call.1} parent=47 // pred_check_branch
          %348 = sbr.rel (%p346) target = $region56
        $region55: #{tpu_custom_call.1} parent=47 // pred_region
          %349 = dma.done %s342, 512
        $region56: #{tpu_custom_call.1} parent=47 // pred_fallthru
          _
        %s350 = sand.u32 %s27, 1
        %s351 = scalar_lea.sflag [#allocation7], %s350
        %s352 = sand.u32 %s167, 1
        %s353 = smul.addr %s352, 16
        %s354 = scalar_lea.vmem [#allocation8], %s353
        // Predicated region
        $region57: #{tpu_custom_call.1} parent=47 // pred_check
          %p355 = pneg %p180
        $region58: #{tpu_custom_call.1} parent=47 // pred_check_branch
          %357 = sbr.rel (%p355) target = $region60
        $region59: #{tpu_custom_call.1} parent=47 // pred_region
          %358 = dma.done %s351, 256
        $region60: #{tpu_custom_call.1} parent=47 // pred_fallthru
          _
        %s359 = sand.u32 %s47, 1
        %s360 = scalar_lea.sflag [#allocation4], %s359
        %s361 = sand.u32 %s47, 1
        %s362 = smul.addr %s361, 8
        %s363 = scalar_lea.vmem [#allocation3], %s362
        %p364 = pneg %p60
        %p365 = pneg %p57
        %p366 = pneg %p81
        %p367 = pneg %p78
        %p368 = pneg %p102
        %p369 = pneg %p99
        %s370 = sand.u32 %s27, 1
        %s371 = scalar_lea.sflag [#allocation7], %s370
        %s372 = sand.u32 %s115, 1
        %s373 = smul.addr %s372, 32
        %s374 = scalar_lea.vmem [#allocation6], %s373
        %p375 = pneg %p128
        %p376 = pneg %p125
        %p377 = scmp.lt.s32.totalorder %s32, 1
        %s378 = scalar_select %p377, %s32, 1
        %s379 = scalar_lea.vmem %s4, %s378
        %p380 = pneg %p154
        %p381 = pneg %p151
        %s382 = sand.u32 %s27, 1
        %s383 = scalar_lea.sflag [#allocation7], %s382
        %s384 = sand.u32 %s167, 1
        %s385 = smul.addr %s384, 16
        %s386 = scalar_lea.vmem [#allocation8], %s385
        %p387 = pneg %p180
        %p388 = pneg %p177
        %p389 = pneg %p201
        %p390 = pneg %p198
        %p391 = pneg %p231
        %p392 = pneg %p228
        %s393 = sand.u32 %s218, 1
        %s394 = scalar_lea.sflag [#allocation5], %s393
        %s395 = sand.u32 %s218, 1
        %s396 = smul.addr %s395, 8
        %s397 = scalar_lea.vmem [#allocation9], %s396
        %p398 = scmp.lt.s32.totalorder %s32, 1
        %s399 = scalar_select %p398, %s32, 1
        %s400 = scalar_lea.vmem %s4, %s399
        %s401 = smul.u32 %s32, 2
        %s402 = sadd.s32 %s401, %s31
        %v403 = vld [vmem:[%s336] sm:$0xff]
        %v404 = vld [vmem:[%s1] sm:$0x1]
        %v405 = vld [vmem:[%s2] sm:$0x1]
        %vm406 = vcmask 261120
        %v407 = vsel %vm406, %v403, 0.0
        %408 = vadd.xlane.f32.xlu0 %v407
        %v409 = vpop.xlane.xlu0 %408
        %v410 = vrcp.pop 32.0
        %v411 = vmul.f32 %v409, %v410
        %v412 = vsub.f32 %v403, %v411
        %v413 = vmul.f32 %v412, %v412
        %v414 = vsel %vm406, %v413, 0.0
        %415 = vadd.xlane.f32.xlu0 %v414
        %v416 = vpop.xlane.xlu0 %415
        %v417 = vmul.f32 %v416, %v410
        %v418 = vadd.f32 %v417, 1e-05
        %v419 = vrsqrt.pop %v418
        %v420 = vmul.f32 %v412, %v419
        %v422 = vlaneseq
        %v423 = vshrl.u32 %v422, 7
        %v424 = vsub.s32 0, %v423
        %v425 = vrot.slane %v404, %v424
        %v427 = vmul.f32 %v420, %v425
        %v429 = vlaneseq
        %v430 = vshrl.u32 %v429, 7
        %v431 = vsub.s32 0, %v430
        %v432 = vrot.slane %v405, %v431
        %v434 = vadd.f32 %v427, %v432
        %v435 = vld [vmem:[%s345] sm:$0xff]
        %v436 = vld [vmem:[%s345 + $0x8] sm:$0xff]
        %v437 = vld [vmem:[%s345 + $0x10] sm:$0xff]
        %v438 = vld [vmem:[%s345 + $0x18] sm:$0xff]
        %v439 = vld [vmem:[%s400] sm:$0x1]
        %v441 = vlaneseq
        %v442 = vshrl.u32 %v441, 7
        %v443 = vsub.s32 0, %v442
        %v444 = vrot.slane %v439, %v443
        %v447 = vsel %vm406, %v434, 0
        %449 = vmatprep.subr.mxu0 0.0
        %450 = vmatpush1.msra.mxu0 %v435
        %451 = vmatprep.subr.mxu0 0.0
        %452 = vmatpush1.msra.mxu0 %v436
        %453 = vmatprep.subr.mxu0 0.0
        %454 = vmatpush1.msra.mxu0 %v437
        %455 = vmatprep.subr.mxu0 0.0
        %456 = vmatpush1.msra.mxu0 %v438
        %457 = vmatprep.subr.mxu0 0.0
        %458 = vmatpush1.msra.mxu0 0.0
        %459 = vmatprep.subr.mxu0 0.0
        %460 = vmatpush1.msra.mxu0 0.0
        %461 = vmatprep.subr.mxu0 0.0
        %462 = vmatpush1.msra.mxu0 0.0
        %463 = vmatprep.subr.mxu0 0.0
        %464 = vmatpush1.msra.mxu0 0.0
        %465 = vmatprep.subr.mxu0 0.0
        %466 = vmatpush1.msra.mxu0 0.0
        %467 = vmatprep.subr.mxu0 0.0
        %468 = vmatpush1.msra.mxu0 0.0
        %469 = vmatprep.subr.mxu0 0.0
        %470 = vmatpush1.msra.mxu0 0.0
        %471 = vmatprep.subr.mxu0 0.0
        %472 = vmatpush1.msra.mxu0 0.0
        %473 = vmatprep.subr.mxu0 0.0
        %474 = vmatpush1.msra.mxu0 0.0
        %475 = vmatprep.subr.mxu0 0.0
        %476 = vmatpush1.msra.mxu0 0.0
        %477 = vmatprep.subr.mxu0 0.0
        %478 = vmatpush1.msra.mxu0 0.0
        %479 = vmatprep.subr.mxu0 0.0
        %480 = vmatpush1.msra.mxu0 0.0
        %481 = vmatprep.subr.mxu0 0.0
        %482 = vmatpush1.msra.mxu0 0.0
        %483 = vmatprep.subr.mxu0 0.0
        %484 = vmatpush1.msra.mxu0 0.0
        %485 = vmatprep.subr.mxu0 0.0
        %486 = vmatpush1.msra.mxu0 0.0
        %487 = vmatprep.subr.mxu0 0.0
        %488 = vmatpush1.msra.mxu0 0.0
        %489 = vmatprep.subr.mxu0 0.0
        %490 = vmatpush1.msra.mxu0 0.0
        %491 = vmatprep.subr.mxu0 0.0
        %492 = vmatpush1.msra.mxu0 0.0
        %493 = vmatprep.subr.mxu0 0.0
        %494 = vmatpush1.msra.mxu0 0.0
        %495 = vmatprep.subr.mxu0 0.0
        %496 = vmatpush1.msra.mxu0 0.0
        %497 = vmatprep.subr.mxu0 0.0
        %498 = vmatpush1.msra.mxu0 0.0
        %499 = vmatprep.subr.mxu0 0.0
        %500 = vmatpush1.msra.mxu0 0.0
        %501 = vmatprep.subr.mxu0 0.0
        %502 = vmatpush1.msra.mxu0 0.0
        %503 = vmatprep.subr.mxu0 0.0
        %504 = vmatpush1.msra.mxu0 0.0
        %505 = vmatprep.subr.mxu0 0.0
        %506 = vmatpush1.msra.mxu0 0.0
        %507 = vmatprep.subr.mxu0 0.0
        %508 = vmatpush1.msra.mxu0 0.0
        %509 = vmatprep.subr.mxu0 0.0
        %510 = vmatpush1.msra.mxu0 0.0
        %511 = vmatprep.subr.mxu0 0.0
        %512 = vmatpush1.msra.mxu0 0.0
        %513 = vmatprep.mubr.f32.mxu0 0.0
        %514 = vmatmul.mubr.f32.gmra.mrb[0].mxu0 %v447
        %v515 = vpop.f32.mrb[0].mxu0
        %v516 = vadd.f32 %v444, %v515
        %v517 = vpop.f32.mrb[0].mxu0
        %518 = vdwg.mxu0
        %v519 = vmul.f32 %v516, 0.35355338
        %521 = vrot.lane.b32.xlu0 %v516, 112
        %v522 = vpop.permute.xlu0 %521
        %vm523 = vcmask 64512
        %v525 = vsel %vm523, %v519, 0
        %v527 = vsel %vm523, %v522, 0
        %529 = vmatprep.subr.mxu0 0.0
        %530 = vmatpush1.xpose.msra.mxu0 %v527
        %531 = vmatprep.subr.mxu0 0.0
        %532 = vmatpush1.xpose.msra.mxu0 0.0
        %533 = vmatprep.subr.mxu0 0.0
        %534 = vmatpush1.xpose.msra.mxu0 0.0
        %535 = vmatprep.subr.mxu0 0.0
        %536 = vmatpush1.xpose.msra.mxu0 0.0
        %537 = vmatprep.subr.mxu0 0.0
        %538 = vmatpush1.xpose.msra.mxu0 0.0
        %539 = vmatprep.subr.mxu0 0.0
        %540 = vmatpush1.xpose.msra.mxu0 0.0
        %541 = vmatprep.subr.mxu0 0.0
        %542 = vmatpush1.xpose.msra.mxu0 0.0
        %543 = vmatprep.subr.mxu0 0.0
        %544 = vmatpush1.xpose.msra.mxu0 0.0
        %545 = vmatprep.subr.mxu0 0.0
        %546 = vmatpush1.xpose.msra.mxu0 0.0
        %547 = vmatprep.subr.mxu0 0.0
        %548 = vmatpush1.xpose.msra.mxu0 0.0
        %549 = vmatprep.subr.mxu0 0.0
        %550 = vmatpush1.xpose.msra.mxu0 0.0
        %551 = vmatprep.subr.mxu0 0.0
        %552 = vmatpush1.xpose.msra.mxu0 0.0
        %553 = vmatprep.subr.mxu0 0.0
        %554 = vmatpush1.xpose.msra.mxu0 0.0
        %555 = vmatprep.subr.mxu0 0.0
        %556 = vmatpush1.xpose.msra.mxu0 0.0
        %557 = vmatprep.subr.mxu0 0.0
        %558 = vmatpush1.xpose.msra.mxu0 0.0
        %559 = vmatprep.subr.mxu0 0.0
        %560 = vmatpush1.xpose.msra.mxu0 0.0
        %561 = vmatprep.subr.mxu0 0.0
        %562 = vmatpush1.xpose.msra.mxu0 0.0
        %563 = vmatprep.subr.mxu0 0.0
        %564 = vmatpush1.xpose.msra.mxu0 0.0
        %565 = vmatprep.subr.mxu0 0.0
        %566 = vmatpush1.xpose.msra.mxu0 0.0
        %567 = vmatprep.subr.mxu0 0.0
        %568 = vmatpush1.xpose.msra.mxu0 0.0
        %569 = vmatprep.subr.mxu0 0.0
        %570 = vmatpush1.xpose.msra.mxu0 0.0
        %571 = vmatprep.subr.mxu0 0.0
        %572 = vmatpush1.xpose.msra.mxu0 0.0
        %573 = vmatprep.subr.mxu0 0.0
        %574 = vmatpush1.xpose.msra.mxu0 0.0
        %575 = vmatprep.subr.mxu0 0.0
        %576 = vmatpush1.xpose.msra.mxu0 0.0
        %577 = vmatprep.subr.mxu0 0.0
        %578 = vmatpush1.xpose.msra.mxu0 0.0
        %579 = vmatprep.subr.mxu0 0.0
        %580 = vmatpush1.xpose.msra.mxu0 0.0
        %581 = vmatprep.subr.mxu0 0.0
        %582 = vmatpush1.xpose.msra.mxu0 0.0
        %583 = vmatprep.subr.mxu0 0.0
        %584 = vmatpush1.xpose.msra.mxu0 0.0
        %585 = vmatprep.subr.mxu0 0.0
        %586 = vmatpush1.xpose.msra.mxu0 0.0
        %587 = vmatprep.subr.mxu0 0.0
        %588 = vmatpush1.xpose.msra.mxu0 0.0
        %589 = vmatprep.subr.mxu0 0.0
        %590 = vmatpush1.xpose.msra.mxu0 0.0
        %591 = vmatprep.subr.mxu0 0.0
        %592 = vmatpush1.xpose.msra.mxu0 0.0
        %593 = vmatprep.mubr.f32.mxu0 0.0
        %594 = vmatmul.mubr.f32.gmra.mrb[0].mxu0 %v525
        %v595 = vpop.f32.mrb[0].mxu0
        %v596 = vadd.f32 0.0, %v595
        %v597 = vpop.f32.mrb[0].mxu0
        %598 = vdwg.mxu0
        %v599 = vsel %vm523, %v596, -inf
        %600 = vmax.xlane.f32.xlu0 %v599
        %v601 = vpop.xlane.xlu0 %600
        %v602 = vsub.f32 %v596, %v601
        %v603 = vmul.f32 %v602, 1.442695
        %v604 = vpow.pop %v603
        %v605 = vsel %vm523, %v604, 0.0
        %606 = vadd.xlane.f32.xlu0 %v605
        %v607 = vpop.xlane.xlu0 %606
        %v608 = vrcp.pop %v607
        %v609 = vmul.f32 %v604, %v608
        %610 = vrot.lane.b32.xlu0 %v516, 96
        %v611 = vpop.permute.xlu0 %610
        %v614 = vsel %vm523, %v609, 0
        %616 = vmatprep.subr.mxu0 0.0
        %617 = vmatpush1.msra.mxu0 %v611
        %618 = vmatprep.subr.mxu0 0.0
        %619 = vmatpush1.msra.mxu0 0.0
        %620 = vmatprep.subr.mxu0 0.0
        %621 = vmatpush1.msra.mxu0 0.0
        %622 = vmatprep.subr.mxu0 0.0
        %623 = vmatpush1.msra.mxu0 0.0
        %624 = vmatprep.subr.mxu0 0.0
        %625 = vmatpush1.msra.mxu0 0.0
        %626 = vmatprep.subr.mxu0 0.0
        %627 = vmatpush1.msra.mxu0 0.0
        %628 = vmatprep.subr.mxu0 0.0
        %629 = vmatpush1.msra.mxu0 0.0
        %630 = vmatprep.subr.mxu0 0.0
        %631 = vmatpush1.msra.mxu0 0.0
        %632 = vmatprep.subr.mxu0 0.0
        %633 = vmatpush1.msra.mxu0 0.0
        %634 = vmatprep.subr.mxu0 0.0
        %635 = vmatpush1.msra.mxu0 0.0
        %636 = vmatprep.subr.mxu0 0.0
        %637 = vmatpush1.msra.mxu0 0.0
        %638 = vmatprep.subr.mxu0 0.0
        %639 = vmatpush1.msra.mxu0 0.0
        %640 = vmatprep.subr.mxu0 0.0
        %641 = vmatpush1.msra.mxu0 0.0
        %642 = vmatprep.subr.mxu0 0.0
        %643 = vmatpush1.msra.mxu0 0.0
        %644 = vmatprep.subr.mxu0 0.0
        %645 = vmatpush1.msra.mxu0 0.0
        %646 = vmatprep.subr.mxu0 0.0
        %647 = vmatpush1.msra.mxu0 0.0
        %648 = vmatprep.subr.mxu0 0.0
        %649 = vmatpush1.msra.mxu0 0.0
        %650 = vmatprep.subr.mxu0 0.0
        %651 = vmatpush1.msra.mxu0 0.0
        %652 = vmatprep.subr.mxu0 0.0
        %653 = vmatpush1.msra.mxu0 0.0
        %654 = vmatprep.subr.mxu0 0.0
        %655 = vmatpush1.msra.mxu0 0.0
        %656 = vmatprep.subr.mxu0 0.0
        %657 = vmatpush1.msra.mxu0 0.0
        %658 = vmatprep.subr.mxu0 0.0
        %659 = vmatpush1.msra.mxu0 0.0
        %660 = vmatprep.subr.mxu0 0.0
        %661 = vmatpush1.msra.mxu0 0.0
        %662 = vmatprep.subr.mxu0 0.0
        %663 = vmatpush1.msra.mxu0 0.0
        %664 = vmatprep.subr.mxu0 0.0
        %665 = vmatpush1.msra.mxu0 0.0
        %666 = vmatprep.subr.mxu0 0.0
        %667 = vmatpush1.msra.mxu0 0.0
        %668 = vmatprep.subr.mxu0 0.0
        %669 = vmatpush1.msra.mxu0 0.0
        %670 = vmatprep.subr.mxu0 0.0
        %671 = vmatpush1.msra.mxu0 0.0
        %672 = vmatprep.subr.mxu0 0.0
        %673 = vmatpush1.msra.mxu0 0.0
        %674 = vmatprep.subr.mxu0 0.0
        %675 = vmatpush1.msra.mxu0 0.0
        %676 = vmatprep.subr.mxu0 0.0
        %677 = vmatpush1.msra.mxu0 0.0
        %678 = vmatprep.subr.mxu0 0.0
        %679 = vmatpush1.msra.mxu0 0.0
        %680 = vmatprep.mubr.f32.mxu0 0.0
        %681 = vmatmul.mubr.f32.gmra.mrb[0].mxu0 %v614
        %v682 = vpop.f32.mrb[0].mxu0
        %v683 = vadd.f32 0.0, %v682
        %v684 = vpop.f32.mrb[0].mxu0
        %685 = vdwg.mxu0
        %686 = vst.msk [vmem:[#allocation2] sm:$0xff] %vm523, %v683
        %687 = vrot.lane.b32.xlu0 %v519, 120
        %v688 = vpop.permute.xlu0 %687
        %689 = vrot.lane.b32.xlu0 %v516, 104
        %v690 = vpop.permute.xlu0 %689
        %v691 = vsel %vm523, %v688, 0
        %v693 = vsel %vm523, %v690, 0
        %695 = vmatprep.subr.mxu0 0.0
        %696 = vmatpush1.xpose.msra.mxu0 %v693
        %697 = vmatprep.subr.mxu0 0.0
        %698 = vmatpush1.xpose.msra.mxu0 0.0
        %699 = vmatprep.subr.mxu0 0.0
        %700 = vmatpush1.xpose.msra.mxu0 0.0
        %701 = vmatprep.subr.mxu0 0.0
        %702 = vmatpush1.xpose.msra.mxu0 0.0
        %703 = vmatprep.subr.mxu0 0.0
        %704 = vmatpush1.xpose.msra.mxu0 0.0
        %705 = vmatprep.subr.mxu0 0.0
        %706 = vmatpush1.xpose.msra.mxu0 0.0
        %707 = vmatprep.subr.mxu0 0.0
        %708 = vmatpush1.xpose.msra.mxu0 0.0
        %709 = vmatprep.subr.mxu0 0.0
        %710 = vmatpush1.xpose.msra.mxu0 0.0
        %711 = vmatprep.subr.mxu0 0.0
        %712 = vmatpush1.xpose.msra.mxu0 0.0
        %713 = vmatprep.subr.mxu0 0.0
        %714 = vmatpush1.xpose.msra.mxu0 0.0
        %715 = vmatprep.subr.mxu0 0.0
        %716 = vmatpush1.xpose.msra.mxu0 0.0
        %717 = vmatprep.subr.mxu0 0.0
        %718 = vmatpush1.xpose.msra.mxu0 0.0
        %719 = vmatprep.subr.mxu0 0.0
        %720 = vmatpush1.xpose.msra.mxu0 0.0
        %721 = vmatprep.subr.mxu0 0.0
        %722 = vmatpush1.xpose.msra.mxu0 0.0
        %723 = vmatprep.subr.mxu0 0.0
        %724 = vmatpush1.xpose.msra.mxu0 0.0
        %725 = vmatprep.subr.mxu0 0.0
        %726 = vmatpush1.xpose.msra.mxu0 0.0
        %727 = vmatprep.subr.mxu0 0.0
        %728 = vmatpush1.xpose.msra.mxu0 0.0
        %729 = vmatprep.subr.mxu0 0.0
        %730 = vmatpush1.xpose.msra.mxu0 0.0
        %731 = vmatprep.subr.mxu0 0.0
        %732 = vmatpush1.xpose.msra.mxu0 0.0
        %733 = vmatprep.subr.mxu0 0.0
        %734 = vmatpush1.xpose.msra.mxu0 0.0
        %735 = vmatprep.subr.mxu0 0.0
        %736 = vmatpush1.xpose.msra.mxu0 0.0
        %737 = vmatprep.subr.mxu0 0.0
        %738 = vmatpush1.xpose.msra.mxu0 0.0
        %739 = vmatprep.subr.mxu0 0.0
        %740 = vmatpush1.xpose.msra.mxu0 0.0
        %741 = vmatprep.subr.mxu0 0.0
        %742 = vmatpush1.xpose.msra.mxu0 0.0
        %743 = vmatprep.subr.mxu0 0.0
        %744 = vmatpush1.xpose.msra.mxu0 0.0
        %745 = vmatprep.subr.mxu0 0.0
        %746 = vmatpush1.xpose.msra.mxu0 0.0
        %747 = vmatprep.subr.mxu0 0.0
        %748 = vmatpush1.xpose.msra.mxu0 0.0
        %749 = vmatprep.subr.mxu0 0.0
        %750 = vmatpush1.xpose.msra.mxu0 0.0
        %751 = vmatprep.subr.mxu0 0.0
        %752 = vmatpush1.xpose.msra.mxu0 0.0
        %753 = vmatprep.subr.mxu0 0.0
        %754 = vmatpush1.xpose.msra.mxu0 0.0
        %755 = vmatprep.subr.mxu0 0.0
        %756 = vmatpush1.xpose.msra.mxu0 0.0
        %757 = vmatprep.subr.mxu0 0.0
        %758 = vmatpush1.xpose.msra.mxu0 0.0
        %759 = vmatprep.mubr.f32.mxu0 0.0
        %760 = vmatmul.mubr.f32.gmra.mrb[0].mxu0 %v691
        %v761 = vpop.f32.mrb[0].mxu0
        %v762 = vadd.f32 0.0, %v761
        %v763 = vpop.f32.mrb[0].mxu0
        %764 = vdwg.mxu0
        %v765 = vsel %vm523, %v762, -inf
        %766 = vmax.xlane.f32.xlu0 %v765
        %v767 = vpop.xlane.xlu0 %766
        %v768 = vsub.f32 %v762, %v767
        %v769 = vmul.f32 %v768, 1.442695
        %v770 = vpow.pop %v769
        %v771 = vsel %vm523, %v770, 0.0
        %772 = vadd.xlane.f32.xlu0 %v771
        %v773 = vpop.xlane.xlu0 %772
        %v774 = vrcp.pop %v773
        %v775 = vmul.f32 %v770, %v774
        %776 = vrot.lane.b32.xlu0 %v516, 88
        %v777 = vpop.permute.xlu0 %776
        %v780 = vsel %vm523, %v775, 0
        %782 = vmatprep.subr.mxu0 0.0
        %783 = vmatpush1.msra.mxu0 %v777
        %784 = vmatprep.subr.mxu0 0.0
        %785 = vmatpush1.msra.mxu0 0.0
        %786 = vmatprep.subr.mxu0 0.0
        %787 = vmatpush1.msra.mxu0 0.0
        %788 = vmatprep.subr.mxu0 0.0
        %789 = vmatpush1.msra.mxu0 0.0
        %790 = vmatprep.subr.mxu0 0.0
        %791 = vmatpush1.msra.mxu0 0.0
        %792 = vmatprep.subr.mxu0 0.0
        %793 = vmatpush1.msra.mxu0 0.0
        %794 = vmatprep.subr.mxu0 0.0
        %795 = vmatpush1.msra.mxu0 0.0
        %796 = vmatprep.subr.mxu0 0.0
        %797 = vmatpush1.msra.mxu0 0.0
        %798 = vmatprep.subr.mxu0 0.0
        %799 = vmatpush1.msra.mxu0 0.0
        %800 = vmatprep.subr.mxu0 0.0
        %801 = vmatpush1.msra.mxu0 0.0
        %802 = vmatprep.subr.mxu0 0.0
        %803 = vmatpush1.msra.mxu0 0.0
        %804 = vmatprep.subr.mxu0 0.0
        %805 = vmatpush1.msra.mxu0 0.0
        %806 = vmatprep.subr.mxu0 0.0
        %807 = vmatpush1.msra.mxu0 0.0
        %808 = vmatprep.subr.mxu0 0.0
        %809 = vmatpush1.msra.mxu0 0.0
        %810 = vmatprep.subr.mxu0 0.0
        %811 = vmatpush1.msra.mxu0 0.0
        %812 = vmatprep.subr.mxu0 0.0
        %813 = vmatpush1.msra.mxu0 0.0
        %814 = vmatprep.subr.mxu0 0.0
        %815 = vmatpush1.msra.mxu0 0.0
        %816 = vmatprep.subr.mxu0 0.0
        %817 = vmatpush1.msra.mxu0 0.0
        %818 = vmatprep.subr.mxu0 0.0
        %819 = vmatpush1.msra.mxu0 0.0
        %820 = vmatprep.subr.mxu0 0.0
        %821 = vmatpush1.msra.mxu0 0.0
        %822 = vmatprep.subr.mxu0 0.0
        %823 = vmatpush1.msra.mxu0 0.0
        %824 = vmatprep.subr.mxu0 0.0
        %825 = vmatpush1.msra.mxu0 0.0
        %826 = vmatprep.subr.mxu0 0.0
        %827 = vmatpush1.msra.mxu0 0.0
        %828 = vmatprep.subr.mxu0 0.0
        %829 = vmatpush1.msra.mxu0 0.0
        %830 = vmatprep.subr.mxu0 0.0
        %831 = vmatpush1.msra.mxu0 0.0
        %832 = vmatprep.subr.mxu0 0.0
        %833 = vmatpush1.msra.mxu0 0.0
        %834 = vmatprep.subr.mxu0 0.0
        %835 = vmatpush1.msra.mxu0 0.0
        %836 = vmatprep.subr.mxu0 0.0
        %837 = vmatpush1.msra.mxu0 0.0
        %838 = vmatprep.subr.mxu0 0.0
        %839 = vmatpush1.msra.mxu0 0.0
        %840 = vmatprep.subr.mxu0 0.0
        %841 = vmatpush1.msra.mxu0 0.0
        %842 = vmatprep.subr.mxu0 0.0
        %843 = vmatpush1.msra.mxu0 0.0
        %844 = vmatprep.subr.mxu0 0.0
        %845 = vmatpush1.msra.mxu0 0.0
        %846 = vmatprep.mubr.f32.mxu0 0.0
        %847 = vmatmul.mubr.f32.gmra.mrb[0].mxu0 %v780
        %v848 = vpop.f32.mrb[0].mxu0
        %v849 = vadd.f32 0.0, %v848
        %v850 = vpop.f32.mrb[0].mxu0
        %851 = vdwg.mxu0
        %853 = vrot.lane.b32.xlu0 %v849, 8
        %v854 = vpop.permute.xlu0 %853
        %vm856 = vcmask 130112
        %857 = vst.msk [vmem:[#allocation2] sm:$0xff] %vm856, %v854
        %v858 = vld [vmem:[#allocation2] sm:$0xff]
        %v859 = vld [vmem:[%s354] sm:$0xff]
        %v860 = vld [vmem:[%s354 + $0x8] sm:$0xff]
        %vm861 = vcmask 130048
        %v863 = vsel %vm861, %v858, 0
        %865 = vmatprep.subr.mxu0 0.0
        %866 = vmatpush1.msra.mxu0 %v859
        %867 = vmatprep.subr.mxu0 0.0
        %868 = vmatpush1.msra.mxu0 %v860
        %869 = vmatprep.subr.mxu0 0.0
        %870 = vmatpush1.msra.mxu0 0.0
        %871 = vmatprep.subr.mxu0 0.0
        %872 = vmatpush1.msra.mxu0 0.0
        %873 = vmatprep.subr.mxu0 0.0
        %874 = vmatpush1.msra.mxu0 0.0
        %875 = vmatprep.subr.mxu0 0.0
        %876 = vmatpush1.msra.mxu0 0.0
        %877 = vmatprep.subr.mxu0 0.0
        %878 = vmatpush1.msra.mxu0 0.0
        %879 = vmatprep.subr.mxu0 0.0
        %880 = vmatpush1.msra.mxu0 0.0
        %881 = vmatprep.subr.mxu0 0.0
        %882 = vmatpush1.msra.mxu0 0.0
        %883 = vmatprep.subr.mxu0 0.0
        %884 = vmatpush1.msra.mxu0 0.0
        %885 = vmatprep.subr.mxu0 0.0
        %886 = vmatpush1.msra.mxu0 0.0
        %887 = vmatprep.subr.mxu0 0.0
        %888 = vmatpush1.msra.mxu0 0.0
        %889 = vmatprep.subr.mxu0 0.0
        %890 = vmatpush1.msra.mxu0 0.0
        %891 = vmatprep.subr.mxu0 0.0
        %892 = vmatpush1.msra.mxu0 0.0
        %893 = vmatprep.subr.mxu0 0.0
        %894 = vmatpush1.msra.mxu0 0.0
        %895 = vmatprep.subr.mxu0 0.0
        %896 = vmatpush1.msra.mxu0 0.0
        %897 = vmatprep.subr.mxu0 0.0
        %898 = vmatpush1.msra.mxu0 0.0
        %899 = vmatprep.subr.mxu0 0.0
        %900 = vmatpush1.msra.mxu0 0.0
        %901 = vmatprep.subr.mxu0 0.0
        %902 = vmatpush1.msra.mxu0 0.0
        %903 = vmatprep.subr.mxu0 0.0
        %904 = vmatpush1.msra.mxu0 0.0
        %905 = vmatprep.subr.mxu0 0.0
        %906 = vmatpush1.msra.mxu0 0.0
        %907 = vmatprep.subr.mxu0 0.0
        %908 = vmatpush1.msra.mxu0 0.0
        %909 = vmatprep.subr.mxu0 0.0
        %910 = vmatpush1.msra.mxu0 0.0
        %911 = vmatprep.subr.mxu0 0.0
        %912 = vmatpush1.msra.mxu0 0.0
        %913 = vmatprep.subr.mxu0 0.0
        %914 = vmatpush1.msra.mxu0 0.0
        %915 = vmatprep.subr.mxu0 0.0
        %916 = vmatpush1.msra.mxu0 0.0
        %917 = vmatprep.subr.mxu0 0.0
        %918 = vmatpush1.msra.mxu0 0.0
        %919 = vmatprep.subr.mxu0 0.0
        %920 = vmatpush1.msra.mxu0 0.0
        %921 = vmatprep.subr.mxu0 0.0
        %922 = vmatpush1.msra.mxu0 0.0
        %923 = vmatprep.subr.mxu0 0.0
        %924 = vmatpush1.msra.mxu0 0.0
        %925 = vmatprep.subr.mxu0 0.0
        %926 = vmatpush1.msra.mxu0 0.0
        %927 = vmatprep.subr.mxu0 0.0
        %928 = vmatpush1.msra.mxu0 0.0
        %929 = vmatprep.mubr.f32.mxu0 0.0
        %930 = vmatmul.mubr.f32.gmra.mrb[0].mxu0 %v863
        %v931 = vpop.f32.mrb[0].mxu0
        %v932 = vadd.f32 0.0, %v931
        %v933 = vpop.f32.mrb[0].mxu0
        %934 = vdwg.mxu0
        %p935 = scmp.eq.s32.totalorder %s32, 0
        // Predicated region
        $region61: #{tpu_custom_call.1} parent=47 // pred_check
          %p936 = pneg %p935
        $region62: #{tpu_custom_call.1} parent=47 // pred_check_branch
          %938 = sbr.rel (%p936) target = $region64
        $region63: #{tpu_custom_call.1} parent=47 // pred_region
          %v939 = vadd.f32 %v403, %v932
          %v940 = vld [vmem:[%s6] sm:$0x1]
          %v942 = vlaneseq
          %v943 = vshrl.u32 %v942, 7
          %v944 = vsub.s32 0, %v943
          %v945 = vrot.slane %v940, %v944
          %v947 = vadd.f32 %v939, %v945
          %948 = vst.msk [vmem:[%s397] sm:$0xff] %vm406, %v947
        $region64: #{tpu_custom_call.1} parent=47 // pred_fallthru
          _
        %p949 = scmp.ne.s32.totalorder %s32, 0
        // Predicated region
        $region65: #{tpu_custom_call.1} parent=47 // pred_check
          %p950 = pneg %p949
        $region66: #{tpu_custom_call.1} parent=47 // pred_check_branch
          %952 = sbr.rel (%p950) target = $region68
        $region67: #{tpu_custom_call.1} parent=47 // pred_region
          %953 = vst.msk [vmem:[%s397] sm:$0xff] %vm406, %v932
        $region68: #{tpu_custom_call.1} parent=47 // pred_fallthru
          _
        %s954 = sand.u32 %s218, 1
        %s955 = scalar_lea.sflag [#allocation5], %s954
        %s956 = sand.u32 %s218, 1
        %s957 = smul.addr %s956, 8
        %s958 = scalar_lea.vmem [#allocation9], %s957
        // Predicated region
        $region69: #{tpu_custom_call.1} parent=47 // pred_check
          %p959 = pneg %p228
        $region70: #{tpu_custom_call.1} parent=47 // pred_check_branch
          %961 = sbr.rel (%p959) target = $region72
        $region71: #{tpu_custom_call.1} parent=47 // pred_region
          %s962 = smul.u32 %s32, 2
          %s963 = sadd.s32 %s962, %s31
          %s965 = ssub.s32 128, 128
          %966 = vsyncadd %s955, %s965
          %s967 = smul.addr %s963, 128
          %s968 = scalar_lea.hbm %s7, %s967
          %s970 = sshll.u32 %s958, 4
          %s971 = int_to_ptr.vmem [resolvable:$true] %s970
          %973 = dma.vmem_to_hbm [thread:$0]  %s971, 128, %s968, %s955
        $region72: #{tpu_custom_call.1} parent=47 // pred_fallthru
          _
      $region48: #{tpu_custom_call.1} parent=5 // pred_fallthru
        _
      %p974 = scmp.le.s32.totalorder 2, %s22
      // Predicated region
      $region73: #{tpu_custom_call.1} parent=5 // pred_check
        %p975 = pneg %p974
      $region74: #{tpu_custom_call.1} parent=5 // pred_check_branch
        %977 = sbr.rel (%p975) target = $region76
      $region75: #{tpu_custom_call.1} parent=5 // pred_region
        %s978 = ssub.s32 %s22, 2
        // Predicated region
        $region77: #{tpu_custom_call.1} parent=75 // pred_check
          %p979 = pneg %p234
        $region78: #{tpu_custom_call.1} parent=75 // pred_check_branch
          %981 = sbr.rel (%p979) target = $region80
        $region79: #{tpu_custom_call.1} parent=75 // pred_region
          %s982 = sand.u32 %s219, 1
          %s983 = scalar_lea.sflag [#allocation5], %s982
          %s984 = sand.u32 %s219, 1
          %s985 = smul.addr %s984, 8
          %s986 = scalar_lea.vmem [#allocation9], %s985
          %987 = dma.done %s983, 128
        $region80: #{tpu_custom_call.1} parent=75 // pred_fallthru
          _
      $region76: #{tpu_custom_call.1} parent=5 // pred_fallthru
        _
    $region6: #{tpu_custom_call.1} parent=1 // loop_footer
      %s26 = sadd.s32 1, %s22
    $region7: #{tpu_custom_call.1} parent=1 // loop_footer_branch
      %21 = sbr.rel target = $region3
    $region8: #{tpu_custom_call.1} parent=1 // loop_exit
      _
    %988 = vsyncpa [#allocation4], 1
    %s989 = scalar_lea.sflag [#allocation4], 1
    %990 = vsyncpa %s989, 1
    %991 = vsyncpa [#allocation7], 1
    %s992 = scalar_lea.sflag [#allocation7], 1
    %993 = vsyncpa %s992, 1
    %994 = vsyncpa [#allocation5], 1
    %s995 = scalar_lea.sflag [#allocation5], 1
    %996 = vsyncpa %s995, 1

// kernel: tpu_custom_call.1
$region0: #{tpu_custom_call.1}
  #allocation0 [shape = 'u32[]', space=smem, size = 0x4, offset = 0x4, fixed_abs, tag = 'smem constant byte address 0x4 - core index']
  #allocation1 [shape = 'u32[144,128]{1,0:T(1,128)}', space=vmem, size = 0x12000, scoped, tag = 'internal scratch']
  #allocation2 [shape = 'f32[8,16]{1,0:T(8,128)}', space=vmem, size = 0x1000, scoped, tag = 'scratch operand']
  %s0 = inlined_call_operand.hbm [shape: f32[2,8,32], index: 0, kind: input, shape index: {}]
  %s1 = inlined_call_operand.vmem [shape: f32[1,32], index: 1, kind: input, shape index: {}]
  %s2 = inlined_call_operand.vmem [shape: f32[1,32], index: 2, kind: input, shape index: {}]
  %s3 = inlined_call_operand.hbm [shape: f32[2,32,48], index: 3, kind: input, shape index: {}]
  %s4 = inlined_call_operand.vmem [shape: f32[2,1,48], index: 4, kind: input, shape index: {}]
  %s5 = inlined_call_operand.hbm [shape: f32[2,16,32], index: 5, kind: input, shape index: {}]
  %s6 = inlined_call_operand.vmem [shape: f32[1,32], index: 6, kind: input, shape index: {}]
  %s7 = inlined_call_operand.hbm [shape: f32[4,8,32], index: 7, kind: output, shape index: {}]
  %s8 = sld [smem:[#allocation0]]
  $region81: #{tpu_custom_call.1} parent=0
    _
  %s10 = ssub.s32 1, %s8
  %s11 = scalar_select 0, %s10, %s8
  $region1: #{tpu_custom_call.1} parent=0
    #allocation3 [shape = 'u8[8192]{0}', space=vmem, size = 0x2000, scoped, tag = 'input window, operand 0']
    #allocation4 [shape = 's32[2]{0}', space=sflag, size = 0x8, scoped, tag = 'scoped memory for tpu_custom_call.1']
    #allocation5 [shape = 's32[2]{0}', space=sflag, size = 0x8, scoped, tag = 'scoped memory for tpu_custom_call.1']
    #allocation6 [shape = 'u8[32768]{0}', space=vmem, size = 0x8000, scoped, tag = 'input window, operand 3']
    #allocation7 [shape = 's32[2]{0}', space=sflag, size = 0x8, scoped, tag = 'scoped memory for tpu_custom_call.1']
    #allocation8 [shape = 'u8[16384]{0}', space=vmem, size = 0x4000, scoped, tag = 'input window, operand 5']
    #allocation9 [shape = 'u8[8192]{0}', space=vmem, size = 0x2000, scoped, tag = 'output window, operand 0']
    %12 = vsyncpa [#allocation4], 0
    %s13 = scalar_lea.sflag [#allocation4], 1
    %14 = vsyncpa %s13, 0
    %15 = vsyncpa [#allocation7], 0
    %s16 = scalar_lea.sflag [#allocation7], 1
    %17 = vsyncpa %s16, 0
    %18 = vsyncpa [#allocation5], 0
    %s19 = scalar_lea.sflag [#allocation5], 1
    %20 = vsyncpa %s19, 0
    loop: start=0, step=1, limit=6
    $region2: #{tpu_custom_call.1} parent=1 // loop_pre_header
      _
    $region3: #{tpu_custom_call.1} parent=1 // loop_header
      %s22 = sphi 0, %s26
      %p23 = scmp.ge.s32.totalorder %s22, 6
      %s29 = sphi 0, %s41
      %s30 = sphi 0, %s37
      %s31 = sphi 0, %s29
      %s32 = sphi 0, %s30
      %s33 = sphi 0, %s31
      %s34 = sphi 0, %s32
      %s44 = sphi 0, %s46
      %s47 = sphi 0, %s44
      %s48 = sphi 0, %s47
      %s64 = sphi 0, %s48
      %s68 = sphi 0, %s68
      %s70 = sphi 0, %s68
      %s71 = sphi 0, %s70
      %s85 = sphi 0, %s71
      %s89 = sphi 0, %s89
      %s91 = sphi 0, %s89
      %s92 = sphi 0, %s91
      %s106 = sphi 0, %s92
      %s112 = sphi 0, %s114
      %s115 = sphi 0, %s112
      %s116 = sphi 0, %s115
      %s132 = sphi 0, %s116
      %s138 = sphi 0, %s140
      %s141 = sphi 0, %s138
      %s142 = sphi 0, %s141
      %s158 = sphi 0, %s142
      %s164 = sphi 0, %s166
      %s167 = sphi 0, %s164
      %s168 = sphi 0, %s167
      %s184 = sphi 0, %s168
      %s188 = sphi 0, %s188
      %s190 = sphi 0, %s188
      %s191 = sphi 0, %s190
      %s205 = sphi 0, %s191
      %s215 = sphi 0, %s217
      %s218 = sphi 0, %s215
      %s219 = sphi 0, %s218
      %s235 = sphi 0, %s219
    $region4: #{tpu_custom_call.1} parent=1 // loop_header_branch
      %25 = sbr.rel (%p23) target = $region8
    $region5: #{tpu_custom_call.1} parent=1 // loop_body
      %s27 = ssub.s32 %s22, 1
      %s28 = ssub.s32 %s22, 2
      %s35 = sadd.s32 1, %s30
      %p36 = scmp.ge.s32.totalorder %s35, 2
      %s37 = scalar_select %p36, 0, %s35
      %s38 = sadd.s32 1, %s29
      %s39 = scalar_select %p36, %s38, %s29
      %p40 = scmp.ge.s32.totalorder %s39, 2
      %s41 = scalar_select %p40, 0, %s39
      %s42 = ssub.s32 %s29, %s41
      %p43 = scmp.eq.s32.totalorder %s42, 0
      %s45 = sadd.s32 %s44, 1
      %s46 = scalar_select %p43, %s44, %s45
      %p49 = pneg %p43
      %p50 = scmp.eq.s32.totalorder %s22, 3
      %p51 = por %p49, %p50
      %p52 = scmp.ne.s32.totalorder %s44, %s47
      %p53 = scmp.eq.s32.totalorder %s22, 0
      %p54 = por %p52, %p53
      %p55 = scmp.ne.s32.totalorder %s44, %s47
      %p56 = scmp.eq.s32.totalorder %s27, 3
      %p57 = por %p55, %p56
      %p58 = scmp.ne.s32.totalorder %s47, %s48
      %p59 = scmp.eq.s32.totalorder %s27, 0
      %p60 = por %p58, %p59
      %p61 = scmp.ne.s32.totalorder %s47, %s48
      %p62 = scmp.eq.s32.totalorder %s28, 3
      %p63 = por %p61, %p62
      %p65 = scmp.ne.s32.totalorder %s48, %s64
      %p66 = scmp.eq.s32.totalorder %s28, 0
      %p67 = por %p65, %p66
      %s69 = sadd.s32 %s68, 1
      %p72 = scmp.eq.s32.totalorder %s22, 3
      %p73 = scmp.ne.s32.totalorder %s68, %s70
      %p74 = scmp.eq.s32.totalorder %s22, 0
      %p75 = por %p73, %p74
      %p76 = scmp.ne.s32.totalorder %s68, %s70
      %p77 = scmp.eq.s32.totalorder %s27, 3
      %p78 = por %p76, %p77
      %p79 = scmp.ne.s32.totalorder %s70, %s71
      %p80 = scmp.eq.s32.totalorder %s27, 0
      %p81 = por %p79, %p80
      %p82 = scmp.ne.s32.totalorder %s70, %s71
      %p83 = scmp.eq.s32.totalorder %s28, 3
      %p84 = por %p82, %p83
      %p86 = scmp.ne.s32.totalorder %s71, %s85
      %p87 = scmp.eq.s32.totalorder %s28, 0
      %p88 = por %p86, %p87
      %s90 = sadd.s32 %s89, 1
      %p93 = scmp.eq.s32.totalorder %s22, 3
      %p94 = scmp.ne.s32.totalorder %s89, %s91
      %p95 = scmp.eq.s32.totalorder %s22, 0
      %p96 = por %p94, %p95
      %p97 = scmp.ne.s32.totalorder %s89, %s91
      %p98 = scmp.eq.s32.totalorder %s27, 3
      %p99 = por %p97, %p98
      %p100 = scmp.ne.s32.totalorder %s91, %s92
      %p101 = scmp.eq.s32.totalorder %s27, 0
      %p102 = por %p100, %p101
      %p103 = scmp.ne.s32.totalorder %s91, %s92
      %p104 = scmp.eq.s32.totalorder %s28, 3
      %p105 = por %p103, %p104
      %p107 = scmp.ne.s32.totalorder %s92, %s106
      %p108 = scmp.eq.s32.totalorder %s28, 0
      %p109 = por %p107, %p108
      %s110 = ssub.s32 %s30, %s37
      %p111 = scmp.eq.s32.totalorder %s110, 0
      %s113 = sadd.s32 %s112, 1
      %s114 = scalar_select %p111, %s112, %s113
      %p117 = pneg %p111
      %p118 = scmp.eq.s32.totalorder %s22, 3
      %p119 = por %p117, %p118
      %p120 = scmp.ne.s32.totalorder %s112, %s115
      %p121 = scmp.eq.s32.totalorder %s22, 0
      %p122 = por %p120, %p121
      %p123 = scmp.ne.s32.totalorder %s112, %s115
      %p124 = scmp.eq.s32.totalorder %s27, 3
      %p125 = por %p123, %p124
      %p126 = scmp.ne.s32.totalorder %s115, %s116
      %p127 = scmp.eq.s32.totalorder %s27, 0
      %p128 = por %p126, %p127
      %p129 = scmp.ne.s32.totalorder %s115, %s116
      %p130 = scmp.eq.s32.totalorder %s28, 3
      %p131 = por %p129, %p130
      %p133 = scmp.ne.s32.totalorder %s116, %s132
      %p134 = scmp.eq.s32.totalorder %s28, 0
      %p135 = por %p133, %p134
      %s136 = ssub.s32 %s30, %s37
      %p137 = scmp.eq.s32.totalorder %s136, 0
      %s139 = sadd.s32 %s138, 1
      %s140 = scalar_select %p137, %s138, %s139
      %p143 = pneg %p137
      %p144 = scmp.eq.s32.totalorder %s22, 3
      %p145 = por %p143, %p144
      %p146 = scmp.ne.s32.totalorder %s138, %s141
      %p147 = scmp.eq.s32.totalorder %s22, 0
      %p148 = por %p146, %p147
      %p149 = scmp.ne.s32.totalorder %s138, %s141
      %p150 = scmp.eq.s32.totalorder %s27, 3
      %p151 = por %p149, %p150
      %p152 = scmp.ne.s32.totalorder %s141, %s142
      %p153 = scmp.eq.s32.totalorder %s27, 0
      %p154 = por %p152, %p153
      %p155 = scmp.ne.s32.totalorder %s141, %s142
      %p156 = scmp.eq.s32.totalorder %s28, 3
      %p157 = por %p155, %p156
      %p159 = scmp.ne.s32.totalorder %s142, %s158
      %p160 = scmp.eq.s32.totalorder %s28, 0
      %p161 = por %p159, %p160
      %s162 = ssub.s32 %s30, %s37
      %p163 = scmp.eq.s32.totalorder %s162, 0
      %s165 = sadd.s32 %s164, 1
      %s166 = scalar_select %p163, %s164, %s165
      %p169 = pneg %p163
      %p170 = scmp.eq.s32.totalorder %s22, 3
      %p171 = por %p169, %p170
      %p172 = scmp.ne.s32.totalorder %s164, %s167
      %p173 = scmp.eq.s32.totalorder %s22, 0
      %p174 = por %p172, %p173
      %p175 = scmp.ne.s32.totalorder %s164, %s167
      %p176 = scmp.eq.s32.totalorder %s27, 3
      %p177 = por %p175, %p176
      %p178 = scmp.ne.s32.totalorder %s167, %s168
      %p179 = scmp.eq.s32.totalorder %s27, 0
      %p180 = por %p178, %p179
      %p181 = scmp.ne.s32.totalorder %s167, %s168
      %p182 = scmp.eq.s32.totalorder %s28, 3
      %p183 = por %p181, %p182
      %p185 = scmp.ne.s32.totalorder %s168, %s184
      %p186 = scmp.eq.s32.totalorder %s28, 0
      %p187 = por %p185, %p186
      %s189 = sadd.s32 %s188, 1
      %p192 = scmp.eq.s32.totalorder %s22, 3
      %p193 = scmp.ne.s32.totalorder %s188, %s190
      %p194 = scmp.eq.s32.totalorder %s22, 0
      %p195 = por %p193, %p194
      %p196 = scmp.ne.s32.totalorder %s188, %s190
      %p197 = scmp.eq.s32.totalorder %s27, 3
      %p198 = por %p196, %p197
      %p199 = scmp.ne.s32.totalorder %s190, %s191
      %p200 = scmp.eq.s32.totalorder %s27, 0
      %p201 = por %p199, %p200
      %p202 = scmp.ne.s32.totalorder %s190, %s191
      %p203 = scmp.eq.s32.totalorder %s28, 3
      %p204 = por %p202, %p203
      %p206 = scmp.ne.s32.totalorder %s191, %s205
      %p207 = scmp.eq.s32.totalorder %s28, 0
      %p208 = por %p206, %p207
      %s209 = smul.u32 %s30, 2
      %s210 = sadd.s32 %s209, %s29
      %s211 = smul.u32 %s37, 2
      %s212 = sadd.s32 %s211, %s41
      %s213 = ssub.s32 %s210, %s212
      %p214 = scmp.eq.s32.totalorder %s213, 0
      %s216 = sadd.s32 %s215, 1
      %s217 = scalar_select %p214, %s215, %s216
      %p220 = pneg %p214
      %p221 = scmp.eq.s32.totalorder %s22, 3
      %p222 = por %p220, %p221
      %p223 = scmp.ne.s32.totalorder %s215, %s218
      %p224 = scmp.eq.s32.totalorder %s22, 0
      %p225 = por %p223, %p224
      %p226 = scmp.ne.s32.totalorder %s215, %s218
      %p227 = scmp.eq.s32.totalorder %s27, 3
      %p228 = por %p226, %p227
      %p229 = scmp.ne.s32.totalorder %s218, %s219
      %p230 = scmp.eq.s32.totalorder %s27, 0
      %p231 = por %p229, %p230
      %p232 = scmp.ne.s32.totalorder %s218, %s219
      %p233 = scmp.eq.s32.totalorder %s28, 3
      %p234 = por %p232, %p233
      %p236 = scmp.ne.s32.totalorder %s219, %s235
      %p237 = scmp.eq.s32.totalorder %s28, 0
      %p238 = por %p236, %p237
      %p239 = scmp.le.s32.totalorder 1, %s22
      %p240 = scmp.lt.s32.totalorder %s22, 5
      %p241 = pnand %p239, %p240
      %p242 = pneg %p241
      // Predicated region
      $region9: #{tpu_custom_call.1} parent=5 // pred_check
        _
      $region10: #{tpu_custom_call.1} parent=5 // pred_check_branch
        %244 = sbr.rel (%p241) target = $region12
      $region11: #{tpu_custom_call.1} parent=5 // pred_region
        %s245 = ssub.s32 %s22, 1
        // Predicated region
        $region13: #{tpu_custom_call.1} parent=11 // pred_check
          %p246 = pneg %p81
        $region14: #{tpu_custom_call.1} parent=11 // pred_check_branch
          %248 = sbr.rel (%p246) target = $region16
        $region15: #{tpu_custom_call.1} parent=11 // pred_region
          _
        $region16: #{tpu_custom_call.1} parent=11 // pred_fallthru
          _
        // Predicated region
        $region17: #{tpu_custom_call.1} parent=11 // pred_check
          %p249 = pneg %p102
        $region18: #{tpu_custom_call.1} parent=11 // pred_check_branch
          %251 = sbr.rel (%p249) target = $region20
        $region19: #{tpu_custom_call.1} parent=11 // pred_region
          _
        $region20: #{tpu_custom_call.1} parent=11 // pred_fallthru
          _
        // Predicated region
        $region21: #{tpu_custom_call.1} parent=11 // pred_check
          %p252 = pneg %p201
        $region22: #{tpu_custom_call.1} parent=11 // pred_check_branch
          %254 = sbr.rel (%p252) target = $region24
        $region23: #{tpu_custom_call.1} parent=11 // pred_region
          _
        $region24: #{tpu_custom_call.1} parent=11 // pred_fallthru
          _
      $region12: #{tpu_custom_call.1} parent=5 // pred_fallthru
        _
      %p255 = scmp.lt.s32.totalorder %s22, 4
      // Predicated region
      $region25: #{tpu_custom_call.1} parent=5 // pred_check
        %p256 = pneg %p255
      $region26: #{tpu_custom_call.1} parent=5 // pred_check_branch
        %258 = sbr.rel (%p256) target = $region28
      $region27: #{tpu_custom_call.1} parent=5 // pred_region
        // Predicated region
        $region29: #{tpu_custom_call.1} parent=27 // pred_check
          %p259 = pneg %p54
        $region30: #{tpu_custom_call.1} parent=27 // pred_check_branch
          %261 = sbr.rel (%p259) target = $region32
        $region31: #{tpu_custom_call.1} parent=27 // pred_region
          %s262 = sand.u32 %s44, 1
          %s263 = scalar_lea.sflag [#allocation4], %s262
          %s264 = sand.u32 %s44, 1
          %s265 = smul.addr %s264, 8
          %s266 = scalar_lea.vmem [#allocation3], %s265
          %s268 = ssub.s32 128, 128
          %269 = vsyncadd %s263, %s268
          %s270 = smul.addr %s29, 128
          %s271 = scalar_lea.hbm %s0, %s270
          %s273 = sshll.u32 %s266, 4
          %s274 = int_to_ptr.vmem [resolvable:$true] %s273
          %276 = dma.hbm_to_vmem [thread:$0]  %s271, 128, %s274, %s263
        $region32: #{tpu_custom_call.1} parent=27 // pred_fallthru
          _
        // Predicated region
        $region33: #{tpu_custom_call.1} parent=27 // pred_check
          %p277 = pneg %p122
        $region34: #{tpu_custom_call.1} parent=27 // pred_check_branch
          %279 = sbr.rel (%p277) target = $region36
        $region35: #{tpu_custom_call.1} parent=27 // pred_region
          %s280 = sand.u32 %s22, 1
          %s281 = scalar_lea.sflag [#allocation7], %s280
          %s282 = sand.u32 %s112, 1
          %s283 = smul.addr %s282, 32
          %s284 = scalar_lea.vmem [#allocation6], %s283
          %s286 = ssub.s32 512, 512
          %287 = vsyncadd %s281, %s286
          %s288 = smul.addr %s30, 4
          %s289 = smul.addr %s288, 128
          %s290 = scalar_lea.hbm %s3, %s289
          %s291 = sshll.u32 %s284, 4
          %s292 = int_to_ptr.vmem [resolvable:$true] %s291
          %297 = dma.hbm_to_vmem [thread:$0]  %s290, 512, %s292, %s281, 128, 128, 8
        $region36: #{tpu_custom_call.1} parent=27 // pred_fallthru
          _
        // Predicated region
        $region37: #{tpu_custom_call.1} parent=27 // pred_check
          %p298 = pneg %p148
        $region38: #{tpu_custom_call.1} parent=27 // pred_check_branch
          %300 = sbr.rel (%p298) target = $region40
        $region39: #{tpu_custom_call.1} parent=27 // pred_region
          %p301 = scmp.lt.s32.totalorder %s30, 1
          %s302 = scalar_select %p301, %s30, 1
          %s303 = scalar_lea.vmem %s4, %s302
        $region40: #{tpu_custom_call.1} parent=27 // pred_fallthru
          _
        // Predicated region
        $region41: #{tpu_custom_call.1} parent=27 // pred_check
          %p304 = pneg %p174
        $region42: #{tpu_custom_call.1} parent=27 // pred_check_branch
          %306 = sbr.rel (%p304) target = $region44
        $region43: #{tpu_custom_call.1} parent=27 // pred_region
          %s307 = sand.u32 %s22, 1
          %s308 = scalar_lea.sflag [#allocation7], %s307
          %s309 = sand.u32 %s164, 1
          %s310 = smul.addr %s309, 16
          %s311 = scalar_lea.vmem [#allocation8], %s310
          %s313 = ssub.s32 256, 256
          %314 = vsyncadd %s308, %s313
          %s315 = smul.addr %s30, 2
          %s316 = smul.addr %s315, 128
          %s317 = scalar_lea.hbm %s5, %s316
          %s318 = sshll.u32 %s311, 4
          %s319 = int_to_ptr.vmem [resolvable:$true] %s318
          %324 = dma.hbm_to_vmem [thread:$0]  %s317, 256, %s319, %s308, 128, 128, 8
        $region44: #{tpu_custom_call.1} parent=27 // pred_fallthru
          _
      $region28: #{tpu_custom_call.1} parent=5 // pred_fallthru
        _
      %p325 = scmp.le.s32.totalorder 1, %s22
      %p326 = scmp.lt.s32.totalorder %s22, 5
      %p327 = pnand %p325, %p326
      %p328 = pneg %p327
      // Predicated region
      $region45: #{tpu_custom_call.1} parent=5 // pred_check
        _
      $region46: #{tpu_custom_call.1} parent=5 // pred_check_branch
        %330 = sbr.rel (%p327) target = $region48
      $region47: #{tpu_custom_call.1} parent=5 // pred_region
        %s331 = ssub.s32 %s22, 1
        %s332 = sand.u32 %s47, 1
        %s333 = scalar_lea.sflag [#allocation4], %s332
        %s334 = sand.u32 %s47, 1
        %s335 = smul.addr %s334, 8
        %s336 = scalar_lea.vmem [#allocation3], %s335
        // Predicated region
        $region49: #{tpu_custom_call.1} parent=47 // pred_check
          %p337 = pneg %p60
        $region50: #{tpu_custom_call.1} parent=47 // pred_check_branch
          %339 = sbr.rel (%p337) target = $region52
        $region51: #{tpu_custom_call.1} parent=47 // pred_region
          %340 = dma.done %s333, 128
        $region52: #{tpu_custom_call.1} parent=47 // pred_fallthru
          _
        %s341 = sand.u32 %s27, 1
        %s342 = scalar_lea.sflag [#allocation7], %s341
        %s343 = sand.u32 %s115, 1
        %s344 = smul.addr %s343, 32
        %s345 = scalar_lea.vmem [#allocation6], %s344
        // Predicated region
        $region53: #{tpu_custom_call.1} parent=47 // pred_check
          %p346 = pneg %p128
        $region54: #{tpu_custom_call.1} parent=47 // pred_check_branch
          %348 = sbr.rel (%p346) target = $region56
        $region55: #{tpu_custom_call.1} parent=47 // pred_region
          %349 = dma.done %s342, 512
        $region56: #{tpu_custom_call.1} parent=47 // pred_fallthru
          _
        %s350 = sand.u32 %s27, 1
        %s351 = scalar_lea.sflag [#allocation7], %s350
        %s352 = sand.u32 %s167, 1
        %s353 = smul.addr %s352, 16
        %s354 = scalar_lea.vmem [#allocation8], %s353
        // Predicated region
        $region57: #{tpu_custom_call.1} parent=47 // pred_check
          %p355 = pneg %p180
        $region58: #{tpu_custom_call.1} parent=47 // pred_check_branch
          %357 = sbr.rel (%p355) target = $region60
        $region59: #{tpu_custom_call.1} parent=47 // pred_region
          %358 = dma.done %s351, 256
        $region60: #{tpu_custom_call.1} parent=47 // pred_fallthru
          _
        %s359 = sand.u32 %s47, 1
        %s360 = scalar_lea.sflag [#allocation4], %s359
        %s361 = sand.u32 %s47, 1
        %s362 = smul.addr %s361, 8
        %s363 = scalar_lea.vmem [#allocation3], %s362
        %p364 = pneg %p60
        %p365 = pneg %p57
        %p366 = pneg %p81
        %p367 = pneg %p78
        %p368 = pneg %p102
        %p369 = pneg %p99
        %s370 = sand.u32 %s27, 1
        %s371 = scalar_lea.sflag [#allocation7], %s370
        %s372 = sand.u32 %s115, 1
        %s373 = smul.addr %s372, 32
        %s374 = scalar_lea.vmem [#allocation6], %s373
        %p375 = pneg %p128
        %p376 = pneg %p125
        %p377 = scmp.lt.s32.totalorder %s32, 1
        %s378 = scalar_select %p377, %s32, 1
        %s379 = scalar_lea.vmem %s4, %s378
        %p380 = pneg %p154
        %p381 = pneg %p151
        %s382 = sand.u32 %s27, 1
        %s383 = scalar_lea.sflag [#allocation7], %s382
        %s384 = sand.u32 %s167, 1
        %s385 = smul.addr %s384, 16
        %s386 = scalar_lea.vmem [#allocation8], %s385
        %p387 = pneg %p180
        %p388 = pneg %p177
        %p389 = pneg %p201
        %p390 = pneg %p198
        %p391 = pneg %p231
        %p392 = pneg %p228
        %s393 = sand.u32 %s218, 1
        %s394 = scalar_lea.sflag [#allocation5], %s393
        %s395 = sand.u32 %s218, 1
        %s396 = smul.addr %s395, 8
        %s397 = scalar_lea.vmem [#allocation9], %s396
        %p398 = scmp.lt.s32.totalorder %s32, 1
        %s399 = scalar_select %p398, %s32, 1
        %s400 = scalar_lea.vmem %s4, %s399
        %s401 = smul.u32 %s32, 2
        %s402 = sadd.s32 %s401, %s31
        %v403 = vld [vmem:[%s336] sm:$0xff]
        %v404 = vld [vmem:[%s1] sm:$0x1]
        %v405 = vld [vmem:[%s2] sm:$0x1]
        %vm406 = vcmask 261120
        %v407 = vsel %vm406, %v403, 0.0
        %408 = vadd.xlane.f32.xlu0 %v407
        %v409 = vpop.xlane.xlu0 %408
        %v410 = vrcp.pop 32.0
        %v411 = vmul.f32 %v409, %v410
        %v412 = vsub.f32 %v403, %v411
        %v413 = vmul.f32 %v412, %v412
        %v414 = vsel %vm406, %v413, 0.0
        %415 = vadd.xlane.f32.xlu0 %v414
        %v416 = vpop.xlane.xlu0 %415
        %v417 = vmul.f32 %v416, %v410
        %v418 = vadd.f32 %v417, 1e-05
        %v419 = vrsqrt.pop %v418
        %v420 = vmul.f32 %v412, %v419
        %v422 = vlaneseq
        %v423 = vshrl.u32 %v422, 7
        %v424 = vsub.s32 0, %v423
        %v425 = vrot.slane %v404, %v424
        %v427 = vmul.f32 %v420, %v425
        %v429 = vlaneseq
        %v430 = vshrl.u32 %v429, 7
        %v431 = vsub.s32 0, %v430
        %v432 = vrot.slane %v405, %v431
        %v434 = vadd.f32 %v427, %v432
        %v435 = vld [vmem:[%s345] sm:$0xff]
        %v436 = vld [vmem:[%s345 + $0x8] sm:$0xff]
        %v437 = vld [vmem:[%s345 + $0x10] sm:$0xff]
        %v438 = vld [vmem:[%s345 + $0x18] sm:$0xff]
        %v439 = vld [vmem:[%s400] sm:$0x1]
        %v441 = vlaneseq
        %v442 = vshrl.u32 %v441, 7
        %v443 = vsub.s32 0, %v442
        %v444 = vrot.slane %v439, %v443
        %v447 = vsel %vm406, %v434, 0
        %449 = vmatprep.subr.mxu0 0.0
        %450 = vmatpush1.msra.mxu0 %v435
        %451 = vmatprep.subr.mxu0 0.0
        %452 = vmatpush1.msra.mxu0 %v436
        %453 = vmatprep.subr.mxu0 0.0
        %454 = vmatpush1.msra.mxu0 %v437
        %455 = vmatprep.subr.mxu0 0.0
        %456 = vmatpush1.msra.mxu0 %v438
        %457 = vmatprep.subr.mxu0 0.0
        %458 = vmatpush1.msra.mxu0 0.0
        %459 = vmatprep.subr.mxu0 0.0
        %460 = vmatpush1.msra.mxu0 0.0
        %461 = vmatprep.subr.mxu0 0.0
        %462 = vmatpush1.msra.mxu0 0.0
        %463 = vmatprep.subr.mxu0 0.0
        %464 = vmatpush1.msra.mxu0 0.0
        %465 = vmatprep.subr.mxu0 0.0
        %466 = vmatpush1.msra.mxu0 0.0
        %467 = vmatprep.subr.mxu0 0.0
        %468 = vmatpush1.msra.mxu0 0.0
        %469 = vmatprep.subr.mxu0 0.0
        %470 = vmatpush1.msra.mxu0 0.0
        %471 = vmatprep.subr.mxu0 0.0
        %472 = vmatpush1.msra.mxu0 0.0
        %473 = vmatprep.subr.mxu0 0.0
        %474 = vmatpush1.msra.mxu0 0.0
        %475 = vmatprep.subr.mxu0 0.0
        %476 = vmatpush1.msra.mxu0 0.0
        %477 = vmatprep.subr.mxu0 0.0
        %478 = vmatpush1.msra.mxu0 0.0
        %479 = vmatprep.subr.mxu0 0.0
        %480 = vmatpush1.msra.mxu0 0.0
        %481 = vmatprep.subr.mxu0 0.0
        %482 = vmatpush1.msra.mxu0 0.0
        %483 = vmatprep.subr.mxu0 0.0
        %484 = vmatpush1.msra.mxu0 0.0
        %485 = vmatprep.subr.mxu0 0.0
        %486 = vmatpush1.msra.mxu0 0.0
        %487 = vmatprep.subr.mxu0 0.0
        %488 = vmatpush1.msra.mxu0 0.0
        %489 = vmatprep.subr.mxu0 0.0
        %490 = vmatpush1.msra.mxu0 0.0
        %491 = vmatprep.subr.mxu0 0.0
        %492 = vmatpush1.msra.mxu0 0.0
        %493 = vmatprep.subr.mxu0 0.0
        %494 = vmatpush1.msra.mxu0 0.0
        %495 = vmatprep.subr.mxu0 0.0
        %496 = vmatpush1.msra.mxu0 0.0
        %497 = vmatprep.subr.mxu0 0.0
        %498 = vmatpush1.msra.mxu0 0.0
        %499 = vmatprep.subr.mxu0 0.0
        %500 = vmatpush1.msra.mxu0 0.0
        %501 = vmatprep.subr.mxu0 0.0
        %502 = vmatpush1.msra.mxu0 0.0
        %503 = vmatprep.subr.mxu0 0.0
        %504 = vmatpush1.msra.mxu0 0.0
        %505 = vmatprep.subr.mxu0 0.0
        %506 = vmatpush1.msra.mxu0 0.0
        %507 = vmatprep.subr.mxu0 0.0
        %508 = vmatpush1.msra.mxu0 0.0
        %509 = vmatprep.subr.mxu0 0.0
        %510 = vmatpush1.msra.mxu0 0.0
        %511 = vmatprep.subr.mxu0 0.0
        %512 = vmatpush1.msra.mxu0 0.0
        %513 = vmatprep.mubr.f32.mxu0 0.0
        %514 = vmatmul.mubr.f32.gmra.mrb[0].mxu0 %v447
        %v515 = vpop.f32.mrb[0].mxu0
        %v516 = vadd.f32 %v444, %v515
        %v517 = vpop.f32.mrb[0].mxu0
        %518 = vdwg.mxu0
        %v519 = vmul.f32 %v516, 0.35355338
        %521 = vrot.lane.b32.xlu0 %v516, 112
        %v522 = vpop.permute.xlu0 %521
        %vm523 = vcmask 64512
        %v525 = vsel %vm523, %v519, 0
        %v527 = vsel %vm523, %v522, 0
        %529 = vmatprep.subr.mxu0 0.0
        %530 = vmatpush1.xpose.msra.mxu0 %v527
        %531 = vmatprep.subr.mxu0 0.0
        %532 = vmatpush1.xpose.msra.mxu0 0.0
        %533 = vmatprep.subr.mxu0 0.0
        %534 = vmatpush1.xpose.msra.mxu0 0.0
        %535 = vmatprep.subr.mxu0 0.0
        %536 = vmatpush1.xpose.msra.mxu0 0.0
        %537 = vmatprep.subr.mxu0 0.0
        %538 = vmatpush1.xpose.msra.mxu0 0.0
        %539 = vmatprep.subr.mxu0 0.0
        %540 = vmatpush1.xpose.msra.mxu0 0.0
        %541 = vmatprep.subr.mxu0 0.0
        %542 = vmatpush1.xpose.msra.mxu0 0.0
        %543 = vmatprep.subr.mxu0 0.0
        %544 = vmatpush1.xpose.msra.mxu0 0.0
        %545 = vmatprep.subr.mxu0 0.0
        %546 = vmatpush1.xpose.msra.mxu0 0.0
        %547 = vmatprep.subr.mxu0 0.0
        %548 = vmatpush1.xpose.msra.mxu0 0.0
        %549 = vmatprep.subr.mxu0 0.0
        %550 = vmatpush1.xpose.msra.mxu0 0.0
        %551 = vmatprep.subr.mxu0 0.0
        %552 = vmatpush1.xpose.msra.mxu0 0.0
        %553 = vmatprep.subr.mxu0 0.0
        %554 = vmatpush1.xpose.msra.mxu0 0.0
        %555 = vmatprep.subr.mxu0 0.0
        %556 = vmatpush1.xpose.msra.mxu0 0.0
        %557 = vmatprep.subr.mxu0 0.0
        %558 = vmatpush1.xpose.msra.mxu0 0.0
        %559 = vmatprep.subr.mxu0 0.0
        %560 = vmatpush1.xpose.msra.mxu0 0.0
        %561 = vmatprep.subr.mxu0 0.0
        %562 = vmatpush1.xpose.msra.mxu0 0.0
        %563 = vmatprep.subr.mxu0 0.0
        %564 = vmatpush1.xpose.msra.mxu0 0.0
        %565 = vmatprep.subr.mxu0 0.0
        %566 = vmatpush1.xpose.msra.mxu0 0.0
        %567 = vmatprep.subr.mxu0 0.0
        %568 = vmatpush1.xpose.msra.mxu0 0.0
        %569 = vmatprep.subr.mxu0 0.0
        %570 = vmatpush1.xpose.msra.mxu0 0.0
        %571 = vmatprep.subr.mxu0 0.0
        %572 = vmatpush1.xpose.msra.mxu0 0.0
        %573 = vmatprep.subr.mxu0 0.0
        %574 = vmatpush1.xpose.msra.mxu0 0.0
        %575 = vmatprep.subr.mxu0 0.0
        %576 = vmatpush1.xpose.msra.mxu0 0.0
        %577 = vmatprep.subr.mxu0 0.0
        %578 = vmatpush1.xpose.msra.mxu0 0.0
        %579 = vmatprep.subr.mxu0 0.0
        %580 = vmatpush1.xpose.msra.mxu0 0.0
        %581 = vmatprep.subr.mxu0 0.0
        %582 = vmatpush1.xpose.msra.mxu0 0.0
        %583 = vmatprep.subr.mxu0 0.0
        %584 = vmatpush1.xpose.msra.mxu0 0.0
        %585 = vmatprep.subr.mxu0 0.0
        %586 = vmatpush1.xpose.msra.mxu0 0.0
        %587 = vmatprep.subr.mxu0 0.0
        %588 = vmatpush1.xpose.msra.mxu0 0.0
        %589 = vmatprep.subr.mxu0 0.0
        %590 = vmatpush1.xpose.msra.mxu0 0.0
        %591 = vmatprep.subr.mxu0 0.0
        %592 = vmatpush1.xpose.msra.mxu0 0.0
        %593 = vmatprep.mubr.f32.mxu0 0.0
        %594 = vmatmul.mubr.f32.gmra.mrb[0].mxu0 %v525
        %v595 = vpop.f32.mrb[0].mxu0
        %v596 = vadd.f32 0.0, %v595
        %v597 = vpop.f32.mrb[0].mxu0
        %598 = vdwg.mxu0
        %v599 = vsel %vm523, %v596, -inf
        %600 = vmax.xlane.f32.xlu0 %v599
        %v601 = vpop.xlane.xlu0 %600
        %v602 = vsub.f32 %v596, %v601
        %v603 = vmul.f32 %v602, 1.442695
        %v604 = vpow.pop %v603
        %v605 = vsel %vm523, %v604, 0.0
        %606 = vadd.xlane.f32.xlu0 %v605
        %v607 = vpop.xlane.xlu0 %606
        %v608 = vrcp.pop %v607
        %v609 = vmul.f32 %v604, %v608
        %610 = vrot.lane.b32.xlu0 %v516, 96
        %v611 = vpop.permute.xlu0 %610
        %v614 = vsel %vm523, %v609, 0
        %616 = vmatprep.subr.mxu0 0.0
        %617 = vmatpush1.msra.mxu0 %v611
        %618 = vmatprep.subr.mxu0 0.0
        %619 = vmatpush1.msra.mxu0 0.0
        %620 = vmatprep.subr.mxu0 0.0
        %621 = vmatpush1.msra.mxu0 0.0
        %622 = vmatprep.subr.mxu0 0.0
        %623 = vmatpush1.msra.mxu0 0.0
        %624 = vmatprep.subr.mxu0 0.0
        %625 = vmatpush1.msra.mxu0 0.0
        %626 = vmatprep.subr.mxu0 0.0
        %627 = vmatpush1.msra.mxu0 0.0
        %628 = vmatprep.subr.mxu0 0.0
        %629 = vmatpush1.msra.mxu0 0.0
        %630 = vmatprep.subr.mxu0 0.0
        %631 = vmatpush1.msra.mxu0 0.0
        %632 = vmatprep.subr.mxu0 0.0
        %633 = vmatpush1.msra.mxu0 0.0
        %634 = vmatprep.subr.mxu0 0.0
        %635 = vmatpush1.msra.mxu0 0.0
        %636 = vmatprep.subr.mxu0 0.0
        %637 = vmatpush1.msra.mxu0 0.0
        %638 = vmatprep.subr.mxu0 0.0
        %639 = vmatpush1.msra.mxu0 0.0
        %640 = vmatprep.subr.mxu0 0.0
        %641 = vmatpush1.msra.mxu0 0.0
        %642 = vmatprep.subr.mxu0 0.0
        %643 = vmatpush1.msra.mxu0 0.0
        %644 = vmatprep.subr.mxu0 0.0
        %645 = vmatpush1.msra.mxu0 0.0
        %646 = vmatprep.subr.mxu0 0.0
        %647 = vmatpush1.msra.mxu0 0.0
        %648 = vmatprep.subr.mxu0 0.0
        %649 = vmatpush1.msra.mxu0 0.0
        %650 = vmatprep.subr.mxu0 0.0
        %651 = vmatpush1.msra.mxu0 0.0
        %652 = vmatprep.subr.mxu0 0.0
        %653 = vmatpush1.msra.mxu0 0.0
        %654 = vmatprep.subr.mxu0 0.0
        %655 = vmatpush1.msra.mxu0 0.0
        %656 = vmatprep.subr.mxu0 0.0
        %657 = vmatpush1.msra.mxu0 0.0
        %658 = vmatprep.subr.mxu0 0.0
        %659 = vmatpush1.msra.mxu0 0.0
        %660 = vmatprep.subr.mxu0 0.0
        %661 = vmatpush1.msra.mxu0 0.0
        %662 = vmatprep.subr.mxu0 0.0
        %663 = vmatpush1.msra.mxu0 0.0
        %664 = vmatprep.subr.mxu0 0.0
        %665 = vmatpush1.msra.mxu0 0.0
        %666 = vmatprep.subr.mxu0 0.0
        %667 = vmatpush1.msra.mxu0 0.0
        %668 = vmatprep.subr.mxu0 0.0
        %669 = vmatpush1.msra.mxu0 0.0
        %670 = vmatprep.subr.mxu0 0.0
        %671 = vmatpush1.msra.mxu0 0.0
        %672 = vmatprep.subr.mxu0 0.0
        %673 = vmatpush1.msra.mxu0 0.0
        %674 = vmatprep.subr.mxu0 0.0
        %675 = vmatpush1.msra.mxu0 0.0
        %676 = vmatprep.subr.mxu0 0.0
        %677 = vmatpush1.msra.mxu0 0.0
        %678 = vmatprep.subr.mxu0 0.0
        %679 = vmatpush1.msra.mxu0 0.0
        %680 = vmatprep.mubr.f32.mxu0 0.0
        %681 = vmatmul.mubr.f32.gmra.mrb[0].mxu0 %v614
        %v682 = vpop.f32.mrb[0].mxu0
        %v683 = vadd.f32 0.0, %v682
        %v684 = vpop.f32.mrb[0].mxu0
        %685 = vdwg.mxu0
        %686 = vst.msk [vmem:[#allocation2] sm:$0xff] %vm523, %v683
        %687 = vrot.lane.b32.xlu0 %v519, 120
        %v688 = vpop.permute.xlu0 %687
        %689 = vrot.lane.b32.xlu0 %v516, 104
        %v690 = vpop.permute.xlu0 %689
        %v691 = vsel %vm523, %v688, 0
        %v693 = vsel %vm523, %v690, 0
        %695 = vmatprep.subr.mxu0 0.0
        %696 = vmatpush1.xpose.msra.mxu0 %v693
        %697 = vmatprep.subr.mxu0 0.0
        %698 = vmatpush1.xpose.msra.mxu0 0.0
        %699 = vmatprep.subr.mxu0 0.0
        %700 = vmatpush1.xpose.msra.mxu0 0.0
        %701 = vmatprep.subr.mxu0 0.0
        %702 = vmatpush1.xpose.msra.mxu0 0.0
        %703 = vmatprep.subr.mxu0 0.0
        %704 = vmatpush1.xpose.msra.mxu0 0.0
        %705 = vmatprep.subr.mxu0 0.0
        %706 = vmatpush1.xpose.msra.mxu0 0.0
        %707 = vmatprep.subr.mxu0 0.0
        %708 = vmatpush1.xpose.msra.mxu0 0.0
        %709 = vmatprep.subr.mxu0 0.0
        %710 = vmatpush1.xpose.msra.mxu0 0.0
        %711 = vmatprep.subr.mxu0 0.0
        %712 = vmatpush1.xpose.msra.mxu0 0.0
        %713 = vmatprep.subr.mxu0 0.0
        %714 = vmatpush1.xpose.msra.mxu0 0.0
        %715 = vmatprep.subr.mxu0 0.0
        %716 = vmatpush1.xpose.msra.mxu0 0.0
        %717 = vmatprep.subr.mxu0 0.0
        %718 = vmatpush1.xpose.msra.mxu0 0.0
        %719 = vmatprep.subr.mxu0 0.0
        %720 = vmatpush1.xpose.msra.mxu0 0.0
        %721 = vmatprep.subr.mxu0 0.0
        %722 = vmatpush1.xpose.msra.mxu0 0.0
        %723 = vmatprep.subr.mxu0 0.0
        %724 = vmatpush1.xpose.msra.mxu0 0.0
        %725 = vmatprep.subr.mxu0 0.0
        %726 = vmatpush1.xpose.msra.mxu0 0.0
        %727 = vmatprep.subr.mxu0 0.0
        %728 = vmatpush1.xpose.msra.mxu0 0.0
        %729 = vmatprep.subr.mxu0 0.0
        %730 = vmatpush1.xpose.msra.mxu0 0.0
        %731 = vmatprep.subr.mxu0 0.0
        %732 = vmatpush1.xpose.msra.mxu0 0.0
        %733 = vmatprep.subr.mxu0 0.0
        %734 = vmatpush1.xpose.msra.mxu0 0.0
        %735 = vmatprep.subr.mxu0 0.0
        %736 = vmatpush1.xpose.msra.mxu0 0.0
        %737 = vmatprep.subr.mxu0 0.0
        %738 = vmatpush1.xpose.msra.mxu0 0.0
        %739 = vmatprep.subr.mxu0 0.0
        %740 = vmatpush1.xpose.msra.mxu0 0.0
        %741 = vmatprep.subr.mxu0 0.0
        %742 = vmatpush1.xpose.msra.mxu0 0.0
        %743 = vmatprep.subr.mxu0 0.0
        %744 = vmatpush1.xpose.msra.mxu0 0.0
        %745 = vmatprep.subr.mxu0 0.0
        %746 = vmatpush1.xpose.msra.mxu0 0.0
        %747 = vmatprep.subr.mxu0 0.0
        %748 = vmatpush1.xpose.msra.mxu0 0.0
        %749 = vmatprep.subr.mxu0 0.0
        %750 = vmatpush1.xpose.msra.mxu0 0.0
        %751 = vmatprep.subr.mxu0 0.0
        %752 = vmatpush1.xpose.msra.mxu0 0.0
        %753 = vmatprep.subr.mxu0 0.0
        %754 = vmatpush1.xpose.msra.mxu0 0.0
        %755 = vmatprep.subr.mxu0 0.0
        %756 = vmatpush1.xpose.msra.mxu0 0.0
        %757 = vmatprep.subr.mxu0 0.0
        %758 = vmatpush1.xpose.msra.mxu0 0.0
        %759 = vmatprep.mubr.f32.mxu0 0.0
        %760 = vmatmul.mubr.f32.gmra.mrb[0].mxu0 %v691
        %v761 = vpop.f32.mrb[0].mxu0
        %v762 = vadd.f32 0.0, %v761
        %v763 = vpop.f32.mrb[0].mxu0
        %764 = vdwg.mxu0
        %v765 = vsel %vm523, %v762, -inf
        %766 = vmax.xlane.f32.xlu0 %v765
        %v767 = vpop.xlane.xlu0 %766
        %v768 = vsub.f32 %v762, %v767
        %v769 = vmul.f32 %v768, 1.442695
        %v770 = vpow.pop %v769
        %v771 = vsel %vm523, %v770, 0.0
        %772 = vadd.xlane.f32.xlu0 %v771
        %v773 = vpop.xlane.xlu0 %772
        %v774 = vrcp.pop %v773
        %v775 = vmul.f32 %v770, %v774
        %776 = vrot.lane.b32.xlu0 %v516, 88
        %v777 = vpop.permute.xlu0 %776
        %v780 = vsel %vm523, %v775, 0
        %782 = vmatprep.subr.mxu0 0.0
        %783 = vmatpush1.msra.mxu0 %v777
        %784 = vmatprep.subr.mxu0 0.0
        %785 = vmatpush1.msra.mxu0 0.0
        %786 = vmatprep.subr.mxu0 0.0
        %787 = vmatpush1.msra.mxu0 0.0
        %788 = vmatprep.subr.mxu0 0.0
        %789 = vmatpush1.msra.mxu0 0.0
        %790 = vmatprep.subr.mxu0 0.0
        %791 = vmatpush1.msra.mxu0 0.0
        %792 = vmatprep.subr.mxu0 0.0
        %793 = vmatpush1.msra.mxu0 0.0
        %794 = vmatprep.subr.mxu0 0.0
        %795 = vmatpush1.msra.mxu0 0.0
        %796 = vmatprep.subr.mxu0 0.0
        %797 = vmatpush1.msra.mxu0 0.0
        %798 = vmatprep.subr.mxu0 0.0
        %799 = vmatpush1.msra.mxu0 0.0
        %800 = vmatprep.subr.mxu0 0.0
        %801 = vmatpush1.msra.mxu0 0.0
        %802 = vmatprep.subr.mxu0 0.0
        %803 = vmatpush1.msra.mxu0 0.0
        %804 = vmatprep.subr.mxu0 0.0
        %805 = vmatpush1.msra.mxu0 0.0
        %806 = vmatprep.subr.mxu0 0.0
        %807 = vmatpush1.msra.mxu0 0.0
        %808 = vmatprep.subr.mxu0 0.0
        %809 = vmatpush1.msra.mxu0 0.0
        %810 = vmatprep.subr.mxu0 0.0
        %811 = vmatpush1.msra.mxu0 0.0
        %812 = vmatprep.subr.mxu0 0.0
        %813 = vmatpush1.msra.mxu0 0.0
        %814 = vmatprep.subr.mxu0 0.0
        %815 = vmatpush1.msra.mxu0 0.0
        %816 = vmatprep.subr.mxu0 0.0
        %817 = vmatpush1.msra.mxu0 0.0
        %818 = vmatprep.subr.mxu0 0.0
        %819 = vmatpush1.msra.mxu0 0.0
        %820 = vmatprep.subr.mxu0 0.0
        %821 = vmatpush1.msra.mxu0 0.0
        %822 = vmatprep.subr.mxu0 0.0
        %823 = vmatpush1.msra.mxu0 0.0
        %824 = vmatprep.subr.mxu0 0.0
        %825 = vmatpush1.msra.mxu0 0.0
        %826 = vmatprep.subr.mxu0 0.0
        %827 = vmatpush1.msra.mxu0 0.0
        %828 = vmatprep.subr.mxu0 0.0
        %829 = vmatpush1.msra.mxu0 0.0
        %830 = vmatprep.subr.mxu0 0.0
        %831 = vmatpush1.msra.mxu0 0.0
        %832 = vmatprep.subr.mxu0 0.0
        %833 = vmatpush1.msra.mxu0 0.0
        %834 = vmatprep.subr.mxu0 0.0
        %835 = vmatpush1.msra.mxu0 0.0
        %836 = vmatprep.subr.mxu0 0.0
        %837 = vmatpush1.msra.mxu0 0.0
        %838 = vmatprep.subr.mxu0 0.0
        %839 = vmatpush1.msra.mxu0 0.0
        %840 = vmatprep.subr.mxu0 0.0
        %841 = vmatpush1.msra.mxu0 0.0
        %842 = vmatprep.subr.mxu0 0.0
        %843 = vmatpush1.msra.mxu0 0.0
        %844 = vmatprep.subr.mxu0 0.0
        %845 = vmatpush1.msra.mxu0 0.0
        %846 = vmatprep.mubr.f32.mxu0 0.0
        %847 = vmatmul.mubr.f32.gmra.mrb[0].mxu0 %v780
        %v848 = vpop.f32.mrb[0].mxu0
        %v849 = vadd.f32 0.0, %v848
        %v850 = vpop.f32.mrb[0].mxu0
        %851 = vdwg.mxu0
        %853 = vrot.lane.b32.xlu0 %v849, 8
        %v854 = vpop.permute.xlu0 %853
        %vm856 = vcmask 130112
        %857 = vst.msk [vmem:[#allocation2] sm:$0xff] %vm856, %v854
        %v858 = vld [vmem:[#allocation2] sm:$0xff]
        %v859 = vld [vmem:[%s354] sm:$0xff]
        %v860 = vld [vmem:[%s354 + $0x8] sm:$0xff]
        %vm861 = vcmask 130048
        %v863 = vsel %vm861, %v858, 0
        %865 = vmatprep.subr.mxu0 0.0
        %866 = vmatpush1.msra.mxu0 %v859
        %867 = vmatprep.subr.mxu0 0.0
        %868 = vmatpush1.msra.mxu0 %v860
        %869 = vmatprep.subr.mxu0 0.0
        %870 = vmatpush1.msra.mxu0 0.0
        %871 = vmatprep.subr.mxu0 0.0
        %872 = vmatpush1.msra.mxu0 0.0
        %873 = vmatprep.subr.mxu0 0.0
        %874 = vmatpush1.msra.mxu0 0.0
        %875 = vmatprep.subr.mxu0 0.0
        %876 = vmatpush1.msra.mxu0 0.0
        %877 = vmatprep.subr.mxu0 0.0
        %878 = vmatpush1.msra.mxu0 0.0
        %879 = vmatprep.subr.mxu0 0.0
        %880 = vmatpush1.msra.mxu0 0.0
        %881 = vmatprep.subr.mxu0 0.0
        %882 = vmatpush1.msra.mxu0 0.0
        %883 = vmatprep.subr.mxu0 0.0
        %884 = vmatpush1.msra.mxu0 0.0
        %885 = vmatprep.subr.mxu0 0.0
        %886 = vmatpush1.msra.mxu0 0.0
        %887 = vmatprep.subr.mxu0 0.0
        %888 = vmatpush1.msra.mxu0 0.0
        %889 = vmatprep.subr.mxu0 0.0
        %890 = vmatpush1.msra.mxu0 0.0
        %891 = vmatprep.subr.mxu0 0.0
        %892 = vmatpush1.msra.mxu0 0.0
        %893 = vmatprep.subr.mxu0 0.0
        %894 = vmatpush1.msra.mxu0 0.0
        %895 = vmatprep.subr.mxu0 0.0
        %896 = vmatpush1.msra.mxu0 0.0
        %897 = vmatprep.subr.mxu0 0.0
        %898 = vmatpush1.msra.mxu0 0.0
        %899 = vmatprep.subr.mxu0 0.0
        %900 = vmatpush1.msra.mxu0 0.0
        %901 = vmatprep.subr.mxu0 0.0
        %902 = vmatpush1.msra.mxu0 0.0
        %903 = vmatprep.subr.mxu0 0.0
        %904 = vmatpush1.msra.mxu0 0.0
        %905 = vmatprep.subr.mxu0 0.0
        %906 = vmatpush1.msra.mxu0 0.0
        %907 = vmatprep.subr.mxu0 0.0
        %908 = vmatpush1.msra.mxu0 0.0
        %909 = vmatprep.subr.mxu0 0.0
        %910 = vmatpush1.msra.mxu0 0.0
        %911 = vmatprep.subr.mxu0 0.0
        %912 = vmatpush1.msra.mxu0 0.0
        %913 = vmatprep.subr.mxu0 0.0
        %914 = vmatpush1.msra.mxu0 0.0
        %915 = vmatprep.subr.mxu0 0.0
        %916 = vmatpush1.msra.mxu0 0.0
        %917 = vmatprep.subr.mxu0 0.0
        %918 = vmatpush1.msra.mxu0 0.0
        %919 = vmatprep.subr.mxu0 0.0
        %920 = vmatpush1.msra.mxu0 0.0
        %921 = vmatprep.subr.mxu0 0.0
        %922 = vmatpush1.msra.mxu0 0.0
        %923 = vmatprep.subr.mxu0 0.0
        %924 = vmatpush1.msra.mxu0 0.0
        %925 = vmatprep.subr.mxu0 0.0
        %926 = vmatpush1.msra.mxu0 0.0
        %927 = vmatprep.subr.mxu0 0.0
        %928 = vmatpush1.msra.mxu0 0.0
        %929 = vmatprep.mubr.f32.mxu0 0.0
        %930 = vmatmul.mubr.f32.gmra.mrb[0].mxu0 %v863
        %v931 = vpop.f32.mrb[0].mxu0
        %v932 = vadd.f32 0.0, %v931
        %v933 = vpop.f32.mrb[0].mxu0
        %934 = vdwg.mxu0
        %p935 = scmp.eq.s32.totalorder %s32, 0
        // Predicated region
        $region61: #{tpu_custom_call.1} parent=47 // pred_check
          %p936 = pneg %p935
        $region62: #{tpu_custom_call.1} parent=47 // pred_check_branch
          %938 = sbr.rel (%p936) target = $region64
        $region63: #{tpu_custom_call.1} parent=47 // pred_region
          %v939 = vadd.f32 %v403, %v932
          %v940 = vld [vmem:[%s6] sm:$0x1]
          %v942 = vlaneseq
          %v943 = vshrl.u32 %v942, 7
          %v944 = vsub.s32 0, %v943
          %v945 = vrot.slane %v940, %v944
          %v947 = vadd.f32 %v939, %v945
          %948 = vst.msk [vmem:[%s397] sm:$0xff] %vm406, %v947
        $region64: #{tpu_custom_call.1} parent=47 // pred_fallthru
          _
        %p949 = scmp.ne.s32.totalorder %s32, 0
        // Predicated region
        $region65: #{tpu_custom_call.1} parent=47 // pred_check
          %p950 = pneg %p949
        $region66: #{tpu_custom_call.1} parent=47 // pred_check_branch
          %952 = sbr.rel (%p950) target = $region68
        $region67: #{tpu_custom_call.1} parent=47 // pred_region
          %953 = vst.msk [vmem:[%s397] sm:$0xff] %vm406, %v932
        $region68: #{tpu_custom_call.1} parent=47 // pred_fallthru
          _
        %s954 = sand.u32 %s218, 1
        %s955 = scalar_lea.sflag [#allocation5], %s954
        %s956 = sand.u32 %s218, 1
        %s957 = smul.addr %s956, 8
        %s958 = scalar_lea.vmem [#allocation9], %s957
        // Predicated region
        $region69: #{tpu_custom_call.1} parent=47 // pred_check
          %p959 = pneg %p228
        $region70: #{tpu_custom_call.1} parent=47 // pred_check_branch
          %961 = sbr.rel (%p959) target = $region72
        $region71: #{tpu_custom_call.1} parent=47 // pred_region
          %s962 = smul.u32 %s32, 2
          %s963 = sadd.s32 %s962, %s31
          %s965 = ssub.s32 128, 128
          %966 = vsyncadd %s955, %s965
          %s967 = smul.addr %s963, 128
          %s968 = scalar_lea.hbm %s7, %s967
          %s970 = sshll.u32 %s958, 4
          %s971 = int_to_ptr.vmem [resolvable:$true] %s970
          %973 = dma.vmem_to_hbm [thread:$0]  %s971, 128, %s968, %s955
        $region72: #{tpu_custom_call.1} parent=47 // pred_fallthru
          _
      $region48: #{tpu_custom_call.1} parent=5 // pred_fallthru
        _
      %p974 = scmp.le.s32.totalorder 2, %s22
      // Predicated region
      $region73: #{tpu_custom_call.1} parent=5 // pred_check
        %p975 = pneg %p974
      $region74: #{tpu_custom_call.1} parent=5 // pred_check_branch
        %977 = sbr.rel (%p975) target = $region76
      $region75: #{tpu_custom_call.1} parent=5 // pred_region
        %s978 = ssub.s32 %s22, 2
        // Predicated region
        $region77: #{tpu_custom_call.1} parent=75 // pred_check
          %p979 = pneg %p234
        $region78: #{tpu_custom_call.1} parent=75 // pred_check_branch
          %981 = sbr.rel (%p979) target = $region80
        $region79: #{tpu_custom_call.1} parent=75 // pred_region
          %s982 = sand.u32 %s219, 1
          %s983 = scalar_lea.sflag [#allocation5], %s982
          %s984 = sand.u32 %s219, 1
          %s985 = smul.addr %s984, 8
          %s986 = scalar_lea.vmem [#allocation9], %s985
          %987 = dma.done %s983, 128
        $region80: #{tpu_custom_call.1} parent=75 // pred_fallthru
          _
      $region76: #{tpu_custom_call.1} parent=5 // pred_fallthru
        _
    $region6: #{tpu_custom_call.1} parent=1 // loop_footer
      %s26 = sadd.s32 1, %s22
    $region7: #{tpu_custom_call.1} parent=1 // loop_footer_branch
      %21 = sbr.rel target = $region3
    $region8: #{tpu_custom_call.1} parent=1 // loop_exit
      _
    %988 = vsyncpa [#allocation4], 1
    %s989 = scalar_lea.sflag [#allocation4], 1
    %990 = vsyncpa %s989, 1
    %991 = vsyncpa [#allocation7], 1
    %s992 = scalar_lea.sflag [#allocation7], 1
    %993 = vsyncpa %s992, 1
    %994 = vsyncpa [#allocation5], 1
    %s995 = scalar_lea.sflag [#allocation5], 1
    %996 = vsyncpa %s995, 1

</llo_original>
